<compile_context>
chip_gen: v7x
topology: tpu7x:2x2x1
jax: 0.10.0
libtpu: 0.0.40
codegen_flags: <defaults>
</compile_context>

<pallas_src>
import numpy as np
import jax
import jax.numpy as jnp
from jax import lax
from jax.experimental import pallas as pl
from jax.experimental.pallas import tpu as pltpu

_LANES = 128
_SUBLANES = 8


# ---------------------------------------------------------------------------
# Hardware queries (defensive: fall back to conservative values on failure).
# ---------------------------------------------------------------------------
def _vmem_capacity_bytes():
    try:
        return int(pltpu.get_tpu_info().vmem_capacity_bytes)
    except Exception:
        return 64 << 20                       # v7x-sized (most conservative) fallback


def _tensorcores_per_chip():
    try:
        info = pltpu.get_tpu_info()
        for name in ("tensorcores_per_chip", "num_tensorcores",
                     "tensor_cores_per_chip", "cores_per_chip"):
            v = getattr(info, name, None)
            if isinstance(v, int) and v > 0:
                return v
    except Exception:
        pass
    return 1


def _dimension_semantics(num_steps):
    # Only CORE_PARALLEL actually changes codegen (shards the node-tile loop
    # across TensorCores on v7x / megacore parts); the plain "parallel" tag is
    # a measured no-op.  Enable it only when a multi-TC chip is positively
    # detected and the grid splits evenly across cores.
    cores = _tensorcores_per_chip()
    if cores > 1 and num_steps >= cores and num_steps % cores == 0:
        return (pltpu.CORE_PARALLEL,)
    return ("arbitrary",)


def _pick_tile_rows(total_rows, bytes_per_row, row_align):
    """Largest row tile (multiple of row_align) whose double-buffered blocks fit
    the per-generation VMEM block budget (v5e/v6e: 32 MiB of 128 MiB physical,
    v7x: 16 MiB of 64 MiB physical)."""
    cap = _vmem_capacity_bytes()
    block_budget = min(cap // 4, 32 << 20)
    rows = block_budget // max(1, 2 * bytes_per_row)      # x2: double buffering
    if rows >= total_rows:
        return total_rows
    return max(row_align, (rows // row_align) * row_align)


def _vmem_limit_bytes(per_step_bytes):
    cap = _vmem_capacity_bytes()
    limit = per_step_bytes + (8 << 20)                    # headroom (wc/w2t/bias/etc.)
    return int(max(32 << 20, min(limit, (cap * 3) // 4)))


# ---------------------------------------------------------------------------
# Kernels.
# ---------------------------------------------------------------------------
def _relayout_kernel(has_sb1, has_sb2):
    """Lane-dense path (H < 128, 128 % H == 0).  Per grid step:
      bias_ref : (1,)          SMEM  bilinear bias
      w2t_ref  : (B, G, 128)   VMEM  fused wc x segment matrix (resident)
      h_pl_ref : (B, TM, 128)  VMEM  streamed tile of "positive" features
      h_mi_ref : (B, TM, 128)  VMEM  streamed tile of "negative" features
      [sb1_ref]: (B, TM, G)    VMEM  optional score bias for sc_1
      [sb2_ref]: (B, TM, G)    VMEM  optional score bias for sc_2
      out_ref  : (B, 2, TM, G) VMEM  fused scores (sc_1 at [:,0], sc_2 at [:,1])
    """
    def kernel(bias_ref, w2t_ref, h_pl_ref, h_mi_ref, *rest):
        idx = 0
        sb1_ref = rest[idx] if has_sb1 else None
        idx += int(has_sb1)
        sb2_ref = rest[idx] if has_sb2 else None
        idx += int(has_sb2)
        out_ref = rest[idx]

        bias = bias_ref[0]
        w2t = w2t_ref[...]                                    # (B, G, 128)

        # sc[b, m, g] = sum_l h[b, m, l] * w2t[b, g, l]
        #             = <features of node (m*G + g), W @ c[b]>
        # One tiny MXU matmul per batch; streamed tiles stay in the input
        # dtype and accumulate in f32 on the MXU.
        sc1 = jnp.einsum("bml,bgl->bmg", h_pl_ref[...], w2t,
                         preferred_element_type=jnp.float32,
                         precision=lax.Precision.HIGHEST) + bias
        sc2 = jnp.einsum("bml,bgl->bmg", h_mi_ref[...], w2t,
                         preferred_element_type=jnp.float32,
                         precision=lax.Precision.HIGHEST) + bias
        if has_sb1:
            sc1 = sc1 + sb1_ref[...].astype(jnp.float32)
        if has_sb2:
            sc2 = sc2 + sb2_ref[...].astype(jnp.float32)

        out_ref[:, 0, :, :] = sc1.astype(out_ref.dtype)
        out_ref[:, 1, :, :] = sc2.astype(out_ref.dtype)

    return kernel


def _rowwise_kernel(has_sb1, has_sb2):
    """Fallback path (H >= 128, or shapes where the free re-layout cannot be
    applied).  Grid over node tiles with blocks:
      wc_ref: (B, H)   h_*: (B, TN, H)   [sb]: (B, TN)   out: (B, 2, TN).
    """
    def kernel(bias_ref, wc_ref, h_pl_ref, h_mi_ref, *rest):
        idx = 0
        sb1_ref = rest[idx] if has_sb1 else None
        idx += int(has_sb1)
        sb2_ref = rest[idx] if has_sb2 else None
        idx += int(has_sb2)
        out_ref = rest[idx]

        bias = bias_ref[0]
        wcb = wc_ref[...][:, None, :]        # hoisted once, reused for both scores

        # Elementwise mul in the input dtype (bf16 VPU on v6e/v7x), f32 reduce.
        sc1 = jnp.sum(h_pl_ref[...] * wcb, axis=-1, dtype=jnp.float32) + bias
        sc2 = jnp.sum(h_mi_ref[...] * wcb, axis=-1, dtype=jnp.float32) + bias
        if has_sb1:
            sc1 = sc1 + sb1_ref[...].astype(jnp.float32)
        if has_sb2:
            sc2 = sc2 + sb2_ref[...].astype(jnp.float32)

        out_ref[:, 0, :] = sc1.astype(out_ref.dtype)
        out_ref[:, 1, :] = sc2.astype(out_ref.dtype)

    return kernel


# ---------------------------------------------------------------------------
# Wrapper.
# ---------------------------------------------------------------------------
def discriminator_forward(c, h_pl, h_mi, weight, bias, s_bias1=None, s_bias2=None):
    """c: (B, H); h_pl, h_mi: (B, N, H); weight: (H, H) (Bilinear weight with the
    out_features=1 dim squeezed); bias: scalar.  Returns logits (B, 2N)."""
    B, N, H = h_pl.shape
    assert c.shape == (B, H) and weight.shape == (H, H)
    assert h_mi.shape == (B, N, H)

    h_dtype = h_pl.dtype
    itemsize = jnp.dtype(h_dtype).itemsize

    # Hoisted c-side contraction (tiny): wc[b, i] = sum_j W[i, j] * c[b, j].
    wc = jnp.dot(c.astype(jnp.float32), weight.astype(jnp.float32).T,
                 precision=lax.Precision.HIGHEST)                     # (B, H)
    bias_arr = jnp.asarray(bias, jnp.float32).reshape(1)

    has_sb1 = s_bias1 is not None
    has_sb2 = s_bias2 is not None
    n_sb = int(has_sb1) + int(has_sb2)

    relayout = (H < _LANES) and (_LANES % H == 0) and (N % (_LANES // H) == 0)

    if relayout:
        G = _LANES // H
        M = (N * H) // _LANES
        # Free contiguous re-layout: each 128-lane row holds G consecutive nodes.
        h_pl_r = h_pl.reshape(B, M, _LANES)
        h_mi_r = h_mi.reshape(B, M, _LANES)
        # Fused (wc x 0/1 segment) weight, contraction dim last on both operands:
        #   w2t[b, g, l] = wc[b, l % H] * (l // H == g)
        lane = jnp.arange(_LANES)
        seg = (lane[None, :] // H == jnp.arange(G)[:, None]).astype(jnp.float32)
        w2t = (jnp.tile(wc, (1, G))[:, None, :] * seg[None]).astype(h_dtype)

        bytes_per_row = (2 * B * _LANES * itemsize       # h_pl + h_mi tile rows
                         + B * 2 * _LANES * 4            # (B,2,·,G) out rows (G lane-padded)
                         + n_sb * B * _LANES * 4)        # optional s_bias rows (lane-padded)
        tm = _pick_tile_rows(M, bytes_per_row, row_align=_SUBLANES)
        num_steps = -(-M // tm)
        per_step_bytes = 2 * tm * bytes_per_row

        in_specs = [
            pl.BlockSpec(memory_space=pltpu.MemorySpace.SMEM),          # bias (scalar)
            pl.BlockSpec((B, G, _LANES), lambda j: (0, 0, 0)),          # w2t (resident)
            pl.BlockSpec((B, tm, _LANES), lambda j: (0, j, 0)),         # h_pl (streamed)
            pl.BlockSpec((B, tm, _LANES), lambda j: (0, j, 0)),         # h_mi (streamed)
        ]
        args = [bias_arr, w2t, h_pl_r, h_mi_r]
        if has_sb1:
            in_specs.append(pl.BlockSpec((B, tm, G), lambda j: (0, j, 0)))
            args.append(s_bias1.astype(jnp.float32).reshape(B, M, G))
        if has_sb2:
            in_specs.append(pl.BlockSpec((B, tm, G), lambda j: (0, j, 0)))
            args.append(s_bias2.astype(jnp.float32).reshape(B, M, G))

        out_shape = jax.ShapeDtypeStruct((B, 2, M, G), jnp.float32)
        out_specs = pl.BlockSpec((B, 2, tm, G), lambda j: (0, 0, j, 0))
        kernel = _relayout_kernel(has_sb1, has_sb2)
    else:
        # TODO(synk): this fallback keeps the original node-major layout; for
        # H < 128 it wastes 128/H of each lane tile.  Only reached when N*H is
        # not a multiple of 128 (or H neither divides nor is a multiple of 128).
        lanes_h = -(-H // _LANES) * _LANES                 # lane-padded feature width
        bytes_per_row = 2 * B * lanes_h * itemsize + B * 2 * 4 + n_sb * B * 4
        tn = _pick_tile_rows(N, bytes_per_row, row_align=_LANES)
        num_steps = -(-N // tn)
        per_step_bytes = 2 * tn * bytes_per_row

        in_specs = [
            pl.BlockSpec(memory_space=pltpu.MemorySpace.SMEM),          # bias (scalar)
            pl.BlockSpec((B, H), lambda j: (0, 0)),                     # wc (resident)
            pl.BlockSpec((B, tn, H), lambda j: (0, j, 0)),              # h_pl (streamed)
            pl.BlockSpec((B, tn, H), lambda j: (0, j, 0)),              # h_mi (streamed)
        ]
        args = [bias_arr, wc.astype(h_dtype), h_pl, h_mi]
        if has_sb1:
            in_specs.append(pl.BlockSpec((B, tn), lambda j: (0, j)))
            args.append(s_bias1.astype(jnp.float32))
        if has_sb2:
            in_specs.append(pl.BlockSpec((B, tn), lambda j: (0, j)))
            args.append(s_bias2.astype(jnp.float32))

        out_shape = jax.ShapeDtypeStruct((B, 2, N), jnp.float32)
        out_specs = pl.BlockSpec((B, 2, tn), lambda j: (0, 0, j))
        kernel = _rowwise_kernel(has_sb1, has_sb2)

    flops = 4 * B * N * H                                   # 2 tensors * 2H flops/element
    bytes_accessed = (2 * B * N * H * itemsize              # streamed h_pl + h_mi
                      + 2 * B * N * 4                       # fused score output
                      + n_sb * B * N * 4 + B * H * 4)

    out = pl.pallas_call(
        kernel,
        out_shape=out_shape,
        grid=(num_steps,),
        in_specs=in_specs,
        out_specs=out_specs,
        compiler_params=pltpu.CompilerParams(
            dimension_semantics=_dimension_semantics(num_steps),
            vmem_limit_bytes=_vmem_limit_bytes(per_step_bytes),
        ),
        cost_estimate=pl.CostEstimate(flops=flops, transcendentals=0,
                                      bytes_accessed=bytes_accessed),
    )(*args)

    # Fused (B, 2, ...) score buffer -> (B, 2N) is a free contiguous reshape
    # (replaces the old concat's extra read+write pass over the logits).
    return out.reshape(B, 2 * N)


# ---------------------------------------------------------------------------
# Reference (numpy, float64) and demo.
# ---------------------------------------------------------------------------
def _reference_np(c, h_pl, h_mi, weight, bias, s_bias1=None, s_bias2=None):
    c64 = np.asarray(c, np.float64)
    w64 = np.asarray(weight, np.float64)
    wc = c64 @ w64.T                                               # (B, H)
    sc1 = np.einsum("bnh,bh->bn", np.asarray(h_pl, np.float64), wc) + float(bias)
    sc2 = np.einsum("bnh,bh->bn", np.asarray(h_mi, np.float64), wc) + float(bias)
    if s_bias1 is not None:
        sc1 = sc1 + np.asarray(s_bias1, np.float64)
    if s_bias2 is not None:
        sc2 = sc2 + np.asarray(s_bias2, np.float64)
    return np.concatenate([sc1, sc2], axis=1)


if __name__ == "__main__":
    B, N, n_h = 2, 8, 32

    key = jax.random.PRNGKey(0)
    k_c, k_pl, k_mi, k_w, k_s1, k_s2 = jax.random.split(key, 6)

    c = jax.random.normal(k_c, (B, n_h), jnp.float32)
    h_pl = jax.random.normal(k_pl, (B, N, n_h), jnp.float32)
    h_mi = jax.random.normal(k_mi, (B, N, n_h), jnp.float32)

    # Deterministic xavier_uniform-like init for the (1, H, H) bilinear weight
    # (out_features dim squeezed); bias initialized to 0 as in weights_init.
    fan_in, fan_out = n_h * n_h, 1 * n_h
    bound = float(np.sqrt(6.0 / (fan_in + fan_out)))
    weight = jax.random.uniform(k_w, (n_h, n_h), jnp.float32, -bound, bound)
    bias = 0.0

    s_bias1 = jax.random.normal(k_s1, (B, N), jnp.float32)
    s_bias2 = jax.random.normal(k_s2, (B, N), jnp.float32)

    # Lane-dense re-layout path (N is a multiple of 128/H = 4).
    logits = discriminator_forward(c, h_pl, h_mi, weight, bias)
    logits_b = discriminator_forward(c, h_pl, h_mi, weight, bias, s_bias1, s_bias2)
    # Ragged-N fallback path (N=7 is not a multiple of 4).
    N2 = 7
    logits_f = discriminator_forward(c, h_pl[:, :N2], h_mi[:, :N2], weight, bias)

    logits, logits_b, logits_f = jax.block_until_ready((logits, logits_b, logits_f))

    ref = _reference_np(c, h_pl, h_mi, weight, bias)
    ref_b = _reference_np(c, h_pl, h_mi, weight, bias, s_bias1, s_bias2)
    ref_f = _reference_np(c, h_pl[:, :N2], h_mi[:, :N2], weight, bias)

    assert logits.shape == (B, 2 * N)
    assert logits_b.shape == (B, 2 * N)
    assert logits_f.shape == (B, 2 * N2)
    assert np.allclose(np.asarray(logits), ref, atol=5e-3, rtol=5e-3), "mismatch vs reference"
    assert np.allclose(np.asarray(logits_b), ref_b, atol=5e-3, rtol=5e-3), "mismatch (s_bias)"
    assert np.allclose(np.asarray(logits_f), ref_f, atol=5e-3, rtol=5e-3), "mismatch (ragged N)"

    print("KERNEL_OK")
</pallas_src>

<mosaic_0001>
module attributes {stable_mosaic.version = 11 : i64} {
  func.func @kernel(%arg0: i32, %arg1: memref<1xf32, #tpu.memory_space<smem>>, %arg2: memref<2x4x128xf32, #tpu.memory_space<vmem>>, %arg3: memref<2x2x128xf32, #tpu.memory_space<vmem>>, %arg4: memref<2x2x128xf32, #tpu.memory_space<vmem>>, %arg5: memref<2x2x2x4xf32, #tpu.memory_space<vmem>>) attributes {dimension_semantics = [#tpu.dimension_semantics<arbitrary>], iteration_bounds = array<i64: 1>, scalar_prefetch = 0 : i64, scratch_operands = 0 : i64, tpu.core_type = #tpu.core_type<tc>, window_params = [{transform_indices = @transform_0, window_bounds = array<i64: 1>}, {pipeline_mode = #tpu.pipeline_mode<synchronous>, transform_indices = @transform_1, window_bounds = array<i64: 2, 4, 128>}, {transform_indices = @transform_2, window_bounds = array<i64: 2, 2, 128>}, {transform_indices = @transform_3, window_bounds = array<i64: 2, 2, 128>}, {transform_indices = @transform_4, window_bounds = array<i64: 2, 2, 2, 4>}]} {
    %c0 = arith.constant 0 : index
    %0 = memref.load %arg1[%c0] : memref<1xf32, #tpu.memory_space<smem>>
    %c0_0 = arith.constant 0 : index
    %c0_1 = arith.constant 0 : index
    %c0_2 = arith.constant 0 : index
    %1 = vector.load %arg2[%c0_0, %c0_1, %c0_2] : memref<2x4x128xf32, #tpu.memory_space<vmem>>, vector<2x4x128xf32>
    %c0_3 = arith.constant 0 : index
    %c0_4 = arith.constant 0 : index
    %c0_5 = arith.constant 0 : index
    %2 = vector.load %arg3[%c0_3, %c0_4, %c0_5] : memref<2x2x128xf32, #tpu.memory_space<vmem>>, vector<2x2x128xf32>
    "tpu.trace_start"() <{level = 10 : i32, message = "bml,bgl->bmg"}> : () -> ()
    %cst = arith.constant dense<0.000000e+00> : vector<2x2x4xf32>
    %3 = tpu.matmul %2, %1, %cst {dimension_numbers = #tpu.dot_dimension_numbers<[2], [2], [1], [1], [0, 0, 0, 1, 1, 1], [0], [0]>, precision = #tpu.contract_precision<fp32>} : vector<2x2x128xf32>, vector<2x4x128xf32>, vector<2x2x4xf32> -> vector<2x2x4xf32>
    "tpu.trace_stop"() : () -> ()
    %4 = vector.broadcast %0 : f32 to vector<2x2x4xf32>
    %5 = arith.addf %3, %4 : vector<2x2x4xf32>
    %c0_6 = arith.constant 0 : index
    %c0_7 = arith.constant 0 : index
    %c0_8 = arith.constant 0 : index
    %6 = vector.load %arg4[%c0_6, %c0_7, %c0_8] : memref<2x2x128xf32, #tpu.memory_space<vmem>>, vector<2x2x128xf32>
    "tpu.trace_start"() <{level = 10 : i32, message = "bml,bgl->bmg"}> : () -> ()
    %cst_9 = arith.constant dense<0.000000e+00> : vector<2x2x4xf32>
    %7 = tpu.matmul %6, %1, %cst_9 {dimension_numbers = #tpu.dot_dimension_numbers<[2], [2], [1], [1], [0, 0, 0, 1, 1, 1], [0], [0]>, precision = #tpu.contract_precision<fp32>} : vector<2x2x128xf32>, vector<2x4x128xf32>, vector<2x2x4xf32> -> vector<2x2x4xf32>
    "tpu.trace_stop"() : () -> ()
    %8 = vector.broadcast %0 : f32 to vector<2x2x4xf32>
    %9 = arith.addf %7, %8 : vector<2x2x4xf32>
    %c0_10 = arith.constant 0 : index
    %c0_11 = arith.constant 0 : index
    %c0_12 = arith.constant 0 : index
    %c0_13 = arith.constant 0 : index
    %10 = vector.load %arg5[%c0_10, %c0_11, %c0_12, %c0_13] : memref<2x2x2x4xf32, #tpu.memory_space<vmem>>, vector<2x1x2x4xf32>
    %11 = vector.shape_cast %10 : vector<2x1x2x4xf32> to vector<2x2x4xf32>
    %12 = vector.shape_cast %5 : vector<2x2x4xf32> to vector<2x1x2x4xf32>
    tpu.vector_store %arg5[%c0_10, %c0_11, %c0_12, %c0_13], %12 {strides = array<i32>} : memref<2x2x2x4xf32, #tpu.memory_space<vmem>>, vector<2x1x2x4xf32>,
    %c0_14 = arith.constant 0 : index
    %c1 = arith.constant 1 : index
    %c0_15 = arith.constant 0 : index
    %c0_16 = arith.constant 0 : index
    %13 = vector.load %arg5[%c0_14, %c1, %c0_15, %c0_16] : memref<2x2x2x4xf32, #tpu.memory_space<vmem>>, vector<2x1x2x4xf32>
    %14 = vector.shape_cast %13 : vector<2x1x2x4xf32> to vector<2x2x4xf32>
    %15 = vector.shape_cast %9 : vector<2x2x4xf32> to vector<2x1x2x4xf32>
    tpu.vector_store %arg5[%c0_14, %c1, %c0_15, %c0_16], %15 {strides = array<i32>} : memref<2x2x2x4xf32, #tpu.memory_space<vmem>>, vector<2x1x2x4xf32>,
    return
  }
  func.func @transform_0(%arg0: i32) -> i32 {
    %c0_i32 = arith.constant 0 : i32
    %c0_i32_0 = arith.constant 0 : i32
    return %c0_i32 : i32
  }
  func.func @transform_1(%arg0: i32) -> (i32, i32, i32) {
    %c0_i32 = arith.constant 0 : i32
    %c0_i32_0 = arith.constant 0 : i32
    %c0_i32_1 = arith.constant 0 : i32
    %c0_i32_2 = arith.constant 0 : i32
    return %c0_i32, %c0_i32_0, %c0_i32_1 : i32, i32, i32
  }
  func.func @transform_2(%arg0: i32) -> (i32, i32, i32) {
    %c0_i32 = arith.constant 0 : i32
    %c0_i32_0 = arith.constant 0 : i32
    %c0_i32_1 = arith.constant 0 : i32
    return %c0_i32, %arg0, %c0_i32_0 : i32, i32, i32
  }
  func.func @transform_3(%arg0: i32) -> (i32, i32, i32) {
    %c0_i32 = arith.constant 0 : i32
    %c0_i32_0 = arith.constant 0 : i32
    %c0_i32_1 = arith.constant 0 : i32
    return %c0_i32, %arg0, %c0_i32_0 : i32, i32, i32
  }
  func.func @transform_4(%arg0: i32) -> (i32, i32, i32, i32) {
    %c0_i32 = arith.constant 0 : i32
    %c0_i32_0 = arith.constant 0 : i32
    %c0_i32_1 = arith.constant 0 : i32
    %c0_i32_2 = arith.constant 0 : i32
    return %c0_i32, %c0_i32_0, %arg0, %c0_i32_1 : i32, i32, i32, i32
  }
}

</mosaic_0001>

<llo_original>
// kernel: tpu_custom_call.1
$region0: #{tpu_custom_call.1}
  #allocation0 [shape = 'u32[]', space=smem, size = 0x4, offset = 0x4, fixed_abs, tag = 'smem constant byte address 0x4 - core index']
  #allocation1 [shape = 'u32[144,128]{1,0:T(1,128)}', space=vmem, size = 0x12000, scoped, tag = 'internal scratch']
  #allocation2 [shape = 'f32[1]{0:T(128)S(6)}', space=smem, size = 0x200, scoped, tag = 'scoped memory for tpu_custom_call.1']
  %s0 = inlined_call_operand.<no memory space> [shape: f32[1], index: 0, kind: input, shape index: {}]
  %s1 = inlined_call_operand.hbm [shape: f32[2,4,128], index: 1, kind: input, shape index: {}]
  %s2 = inlined_call_operand.vmem [shape: f32[2,2,128], index: 2, kind: input, shape index: {}]
  %s3 = inlined_call_operand.vmem [shape: f32[2,2,128], index: 3, kind: input, shape index: {}]
  %s4 = inlined_call_operand.hbm [shape: f32[2,2,2,4], index: 4, kind: output, shape index: {}]
  %s5 = sld [smem:[#allocation0]]
  $region30: #{tpu_custom_call.1} parent=0
    _
  %s7 = ssub.s32 1, %s5
  %s8 = scalar_select 0, %s7, %s5
  %9 = sst [smem:[#allocation2]] %s0
  $region1: #{tpu_custom_call.1} parent=0
    #allocation3 [shape = 'u8[4096]{0}', space=vmem, size = 0x1000, scoped, tag = 'input window, operand 1, single buffered']
    #allocation4 [shape = 's32[1]{0}', space=sflag, size = 0x4, scoped, tag = 'scoped memory for tpu_custom_call.1']
    #allocation5 [shape = 's32[1]{0}', space=sflag, size = 0x4, scoped, tag = 'scoped memory for tpu_custom_call.1']
    #allocation6 [shape = 'u8[4096]{0}', space=vmem, size = 0x1000, scoped, tag = 'output window, operand 0, single buffered']
    %10 = vsyncpa [#allocation4], 0
    %11 = vsyncpa [#allocation5], 0
    // Predicated region
    $region2: #{tpu_custom_call.1} parent=1 // pred_check
      _
    $region3: #{tpu_custom_call.1} parent=1 // pred_check_branch
      %13 = sbr.rel (0) target = $region5
    $region4: #{tpu_custom_call.1} parent=1 // pred_region
      _
    $region5: #{tpu_custom_call.1} parent=1 // pred_fallthru
      _
    // Predicated region
    $region6: #{tpu_custom_call.1} parent=1 // pred_check
      _
    $region7: #{tpu_custom_call.1} parent=1 // pred_check_branch
      %15 = sbr.rel (0) target = $region9
    $region8: #{tpu_custom_call.1} parent=1 // pred_region
      %s17 = ssub.s32 128, 128
      %18 = vsyncadd [#allocation4], %s17
      %s19 = sshll.u32 [#allocation3], 4
      %s20 = int_to_ptr.vmem [resolvable:$true] %s19
      %25 = dma.hbm_to_vmem [thread:$0]  %s1, 128, %s20, [#allocation4], 64, 64, 4
    $region9: #{tpu_custom_call.1} parent=1 // pred_fallthru
      _
    // Predicated region
    $region10: #{tpu_custom_call.1} parent=1 // pred_check
      _
    $region11: #{tpu_custom_call.1} parent=1 // pred_check_branch
      %27 = sbr.rel (0) target = $region13
    $region12: #{tpu_custom_call.1} parent=1 // pred_region
      _
    $region13: #{tpu_custom_call.1} parent=1 // pred_fallthru
      _
    // Predicated region
    $region14: #{tpu_custom_call.1} parent=1 // pred_check
      _
    $region15: #{tpu_custom_call.1} parent=1 // pred_check_branch
      %29 = sbr.rel (0) target = $region17
    $region16: #{tpu_custom_call.1} parent=1 // pred_region
      _
    $region17: #{tpu_custom_call.1} parent=1 // pred_fallthru
      _
    // Predicated region
    $region18: #{tpu_custom_call.1} parent=1 // pred_check
      _
    $region19: #{tpu_custom_call.1} parent=1 // pred_check_branch
      %31 = sbr.rel (0) target = $region21
    $region20: #{tpu_custom_call.1} parent=1 // pred_region
      %32 = dma.done [#allocation4], 128
    $region21: #{tpu_custom_call.1} parent=1 // pred_fallthru
      _
    %s33 = sld [smem:[#allocation2]]
    %v34 = vld [vmem:[#allocation3] sm:$0xf]
    %v35 = vld [vmem:[#allocation3 + $0x4] sm:$0xf]
    %v36 = vld [vmem:[%s2] sm:$0x3]
    %v37 = vld [vmem:[%s2 + $0x2] sm:$0x3]
    %v38 = vstv %s33
    %39 = vmatprep.subr.mxu0 0.0
    %v40 = vand.u32 %v34, 4294901760
    %41 = vmatpush1.xpose.msra.mxu0 %v40
    %42 = vmatprep.subr.mxu0 0.0
    %43 = vmatpush1.xpose.msra.mxu0 0.0
    %44 = vmatprep.subr.mxu0 0.0
    %45 = vmatpush1.xpose.msra.mxu0 0.0
    %46 = vmatprep.subr.mxu0 0.0
    %47 = vmatpush1.xpose.msra.mxu0 0.0
    %48 = vmatprep.subr.mxu0 0.0
    %49 = vmatpush1.xpose.msra.mxu0 0.0
    %50 = vmatprep.subr.mxu0 0.0
    %51 = vmatpush1.xpose.msra.mxu0 0.0
    %52 = vmatprep.subr.mxu0 0.0
    %53 = vmatpush1.xpose.msra.mxu0 0.0
    %54 = vmatprep.subr.mxu0 0.0
    %55 = vmatpush1.xpose.msra.mxu0 0.0
    %56 = vmatprep.subr.mxu0 0.0
    %57 = vmatpush1.xpose.msra.mxu0 0.0
    %58 = vmatprep.subr.mxu0 0.0
    %59 = vmatpush1.xpose.msra.mxu0 0.0
    %60 = vmatprep.subr.mxu0 0.0
    %61 = vmatpush1.xpose.msra.mxu0 0.0
    %62 = vmatprep.subr.mxu0 0.0
    %63 = vmatpush1.xpose.msra.mxu0 0.0
    %64 = vmatprep.subr.mxu0 0.0
    %65 = vmatpush1.xpose.msra.mxu0 0.0
    %66 = vmatprep.subr.mxu0 0.0
    %67 = vmatpush1.xpose.msra.mxu0 0.0
    %68 = vmatprep.subr.mxu0 0.0
    %69 = vmatpush1.xpose.msra.mxu0 0.0
    %70 = vmatprep.subr.mxu0 0.0
    %71 = vmatpush1.xpose.msra.mxu0 0.0
    %72 = vmatprep.subr.mxu0 0.0
    %73 = vmatpush1.xpose.msra.mxu0 0.0
    %74 = vmatprep.subr.mxu0 0.0
    %75 = vmatpush1.xpose.msra.mxu0 0.0
    %76 = vmatprep.subr.mxu0 0.0
    %77 = vmatpush1.xpose.msra.mxu0 0.0
    %78 = vmatprep.subr.mxu0 0.0
    %79 = vmatpush1.xpose.msra.mxu0 0.0
    %80 = vmatprep.subr.mxu0 0.0
    %81 = vmatpush1.xpose.msra.mxu0 0.0
    %82 = vmatprep.subr.mxu0 0.0
    %83 = vmatpush1.xpose.msra.mxu0 0.0
    %84 = vmatprep.subr.mxu0 0.0
    %85 = vmatpush1.xpose.msra.mxu0 0.0
    %86 = vmatprep.subr.mxu0 0.0
    %87 = vmatpush1.xpose.msra.mxu0 0.0
    %88 = vmatprep.subr.mxu0 0.0
    %89 = vmatpush1.xpose.msra.mxu0 0.0
    %90 = vmatprep.subr.mxu0 0.0
    %91 = vmatpush1.xpose.msra.mxu0 0.0
    %92 = vmatprep.subr.mxu0 0.0
    %93 = vmatpush1.xpose.msra.mxu0 0.0
    %94 = vmatprep.subr.mxu0 0.0
    %95 = vmatpush1.xpose.msra.mxu0 0.0
    %96 = vmatprep.subr.mxu0 0.0
    %97 = vmatpush1.xpose.msra.mxu0 0.0
    %98 = vmatprep.subr.mxu0 0.0
    %99 = vmatpush1.xpose.msra.mxu0 0.0
    %100 = vmatprep.subr.mxu0 0.0
    %101 = vmatpush1.xpose.msra.mxu0 0.0
    %102 = vmatprep.subr.mxu0 0.0
    %103 = vmatpush1.xpose.msra.mxu0 0.0
    %104 = vmatprep.mubr.f32.mxu0 0.0
    %v105 = vand.u32 %v36, 4294901760
    %v106 = vsub.f32 %v36, %v105
    %v107 = vand.u32 %v106, 4294901760
    %v108 = vsub.f32 %v106, %v107
    %v109 = vand.u32 %v108, 4294901760
    %110 = vmatmul.mubr.f32.gmra.mrb[0].mxu0 %v109
    %v111 = vpop.f32.mrb[0].mxu0
    %v112 = vadd.f32 %v38, %v111
    %v113 = vpop.f32.mrb[0].mxu0
    %114 = vdwg.mxu0
    %115 = vmatprep.subr.mxu0 0.0
    %v116 = vand.u32 %v34, 4294901760
    %v117 = vsub.f32 %v34, %v116
    %v118 = vand.u32 %v117, 4294901760
    %v119 = vsub.f32 %v117, %v118
    %v120 = vand.u32 %v119, 4294901760
    %121 = vmatpush1.xpose.msra.mxu0 %v120
    %122 = vmatprep.subr.mxu0 0.0
    %123 = vmatpush1.xpose.msra.mxu0 0.0
    %124 = vmatprep.subr.mxu0 0.0
    %125 = vmatpush1.xpose.msra.mxu0 0.0
    %126 = vmatprep.subr.mxu0 0.0
    %127 = vmatpush1.xpose.msra.mxu0 0.0
    %128 = vmatprep.subr.mxu0 0.0
    %129 = vmatpush1.xpose.msra.mxu0 0.0
    %130 = vmatprep.subr.mxu0 0.0
    %131 = vmatpush1.xpose.msra.mxu0 0.0
    %132 = vmatprep.subr.mxu0 0.0
    %133 = vmatpush1.xpose.msra.mxu0 0.0
    %134 = vmatprep.subr.mxu0 0.0
    %135 = vmatpush1.xpose.msra.mxu0 0.0
    %136 = vmatprep.subr.mxu0 0.0
    %137 = vmatpush1.xpose.msra.mxu0 0.0
    %138 = vmatprep.subr.mxu0 0.0
    %139 = vmatpush1.xpose.msra.mxu0 0.0
    %140 = vmatprep.subr.mxu0 0.0
    %141 = vmatpush1.xpose.msra.mxu0 0.0
    %142 = vmatprep.subr.mxu0 0.0
    %143 = vmatpush1.xpose.msra.mxu0 0.0
    %144 = vmatprep.subr.mxu0 0.0
    %145 = vmatpush1.xpose.msra.mxu0 0.0
    %146 = vmatprep.subr.mxu0 0.0
    %147 = vmatpush1.xpose.msra.mxu0 0.0
    %148 = vmatprep.subr.mxu0 0.0
    %149 = vmatpush1.xpose.msra.mxu0 0.0
    %150 = vmatprep.subr.mxu0 0.0
    %151 = vmatpush1.xpose.msra.mxu0 0.0
    %152 = vmatprep.subr.mxu0 0.0
    %153 = vmatpush1.xpose.msra.mxu0 0.0
    %154 = vmatprep.subr.mxu0 0.0
    %155 = vmatpush1.xpose.msra.mxu0 0.0
    %156 = vmatprep.subr.mxu0 0.0
    %157 = vmatpush1.xpose.msra.mxu0 0.0
    %158 = vmatprep.subr.mxu0 0.0
    %159 = vmatpush1.xpose.msra.mxu0 0.0
    %160 = vmatprep.subr.mxu0 0.0
    %161 = vmatpush1.xpose.msra.mxu0 0.0
    %162 = vmatprep.subr.mxu0 0.0
    %163 = vmatpush1.xpose.msra.mxu0 0.0
    %164 = vmatprep.subr.mxu0 0.0
    %165 = vmatpush1.xpose.msra.mxu0 0.0
    %166 = vmatprep.subr.mxu0 0.0
    %167 = vmatpush1.xpose.msra.mxu0 0.0
    %168 = vmatprep.subr.mxu0 0.0
    %169 = vmatpush1.xpose.msra.mxu0 0.0
    %170 = vmatprep.subr.mxu0 0.0
    %171 = vmatpush1.xpose.msra.mxu0 0.0
    %172 = vmatprep.subr.mxu0 0.0
    %173 = vmatpush1.xpose.msra.mxu0 0.0
    %174 = vmatprep.subr.mxu0 0.0
    %175 = vmatpush1.xpose.msra.mxu0 0.0
    %176 = vmatprep.subr.mxu0 0.0
    %177 = vmatpush1.xpose.msra.mxu0 0.0
    %178 = vmatprep.subr.mxu0 0.0
    %179 = vmatpush1.xpose.msra.mxu0 0.0
    %180 = vmatprep.subr.mxu0 0.0
    %181 = vmatpush1.xpose.msra.mxu0 0.0
    %182 = vmatprep.subr.mxu0 0.0
    %183 = vmatpush1.xpose.msra.mxu0 0.0
    %184 = vmatprep.mubr.f32.mxu0 0.0
    %v185 = vand.u32 %v36, 4294901760
    %186 = vmatmul.mubr.f32.gmra.mrb[0].mxu0 %v185
    %v187 = vpop.f32.mrb[0].mxu0
    %v188 = vadd.f32 %v112, %v187
    %v189 = vpop.f32.mrb[0].mxu0
    %190 = vdwg.mxu0
    %191 = vmatprep.subr.mxu0 0.0
    %v192 = vand.u32 %v34, 4294901760
    %v193 = vsub.f32 %v34, %v192
    %194 = vmatpush1.xpose.msra.mxu0 %v193
    %195 = vmatprep.subr.mxu0 0.0
    %196 = vmatpush1.xpose.msra.mxu0 0.0
    %197 = vmatprep.subr.mxu0 0.0
    %198 = vmatpush1.xpose.msra.mxu0 0.0
    %199 = vmatprep.subr.mxu0 0.0
    %200 = vmatpush1.xpose.msra.mxu0 0.0
    %201 = vmatprep.subr.mxu0 0.0
    %202 = vmatpush1.xpose.msra.mxu0 0.0
    %203 = vmatprep.subr.mxu0 0.0
    %204 = vmatpush1.xpose.msra.mxu0 0.0
    %205 = vmatprep.subr.mxu0 0.0
    %206 = vmatpush1.xpose.msra.mxu0 0.0
    %207 = vmatprep.subr.mxu0 0.0
    %208 = vmatpush1.xpose.msra.mxu0 0.0
    %209 = vmatprep.subr.mxu0 0.0
    %210 = vmatpush1.xpose.msra.mxu0 0.0
    %211 = vmatprep.subr.mxu0 0.0
    %212 = vmatpush1.xpose.msra.mxu0 0.0
    %213 = vmatprep.subr.mxu0 0.0
    %214 = vmatpush1.xpose.msra.mxu0 0.0
    %215 = vmatprep.subr.mxu0 0.0
    %216 = vmatpush1.xpose.msra.mxu0 0.0
    %217 = vmatprep.subr.mxu0 0.0
    %218 = vmatpush1.xpose.msra.mxu0 0.0
    %219 = vmatprep.subr.mxu0 0.0
    %220 = vmatpush1.xpose.msra.mxu0 0.0
    %221 = vmatprep.subr.mxu0 0.0
    %222 = vmatpush1.xpose.msra.mxu0 0.0
    %223 = vmatprep.subr.mxu0 0.0
    %224 = vmatpush1.xpose.msra.mxu0 0.0
    %225 = vmatprep.subr.mxu0 0.0
    %226 = vmatpush1.xpose.msra.mxu0 0.0
    %227 = vmatprep.subr.mxu0 0.0
    %228 = vmatpush1.xpose.msra.mxu0 0.0
    %229 = vmatprep.subr.mxu0 0.0
    %230 = vmatpush1.xpose.msra.mxu0 0.0
    %231 = vmatprep.subr.mxu0 0.0
    %232 = vmatpush1.xpose.msra.mxu0 0.0
    %233 = vmatprep.subr.mxu0 0.0
    %234 = vmatpush1.xpose.msra.mxu0 0.0
    %235 = vmatprep.subr.mxu0 0.0
    %236 = vmatpush1.xpose.msra.mxu0 0.0
    %237 = vmatprep.subr.mxu0 0.0
    %238 = vmatpush1.xpose.msra.mxu0 0.0
    %239 = vmatprep.subr.mxu0 0.0
    %240 = vmatpush1.xpose.msra.mxu0 0.0
    %241 = vmatprep.subr.mxu0 0.0
    %242 = vmatpush1.xpose.msra.mxu0 0.0
    %243 = vmatprep.subr.mxu0 0.0
    %244 = vmatpush1.xpose.msra.mxu0 0.0
    %245 = vmatprep.subr.mxu0 0.0
    %246 = vmatpush1.xpose.msra.mxu0 0.0
    %247 = vmatprep.subr.mxu0 0.0
    %248 = vmatpush1.xpose.msra.mxu0 0.0
    %249 = vmatprep.subr.mxu0 0.0
    %250 = vmatpush1.xpose.msra.mxu0 0.0
    %251 = vmatprep.subr.mxu0 0.0
    %252 = vmatpush1.xpose.msra.mxu0 0.0
    %253 = vmatprep.subr.mxu0 0.0
    %254 = vmatpush1.xpose.msra.mxu0 0.0
    %255 = vmatprep.subr.mxu0 0.0
    %256 = vmatpush1.xpose.msra.mxu0 0.0
    %257 = vmatprep.mubr.f32.mxu0 0.0
    %v258 = vand.u32 %v36, 4294901760
    %v259 = vsub.f32 %v36, %v258
    %260 = vmatmul.mubr.f32.gmra.mrb[0].mxu0 %v259
    %v261 = vpop.f32.mrb[0].mxu0
    %v262 = vadd.f32 %v188, %v261
    %v263 = vpop.f32.mrb[0].mxu0
    %264 = vdwg.mxu0
    %265 = vmatprep.subr.mxu0 0.0
    %v266 = vand.u32 %v34, 4294901760
    %267 = vmatpush1.xpose.msra.mxu0 %v266
    %268 = vmatprep.subr.mxu0 0.0
    %269 = vmatpush1.xpose.msra.mxu0 0.0
    %270 = vmatprep.subr.mxu0 0.0
    %271 = vmatpush1.xpose.msra.mxu0 0.0
    %272 = vmatprep.subr.mxu0 0.0
    %273 = vmatpush1.xpose.msra.mxu0 0.0
    %274 = vmatprep.subr.mxu0 0.0
    %275 = vmatpush1.xpose.msra.mxu0 0.0
    %276 = vmatprep.subr.mxu0 0.0
    %277 = vmatpush1.xpose.msra.mxu0 0.0
    %278 = vmatprep.subr.mxu0 0.0
    %279 = vmatpush1.xpose.msra.mxu0 0.0
    %280 = vmatprep.subr.mxu0 0.0
    %281 = vmatpush1.xpose.msra.mxu0 0.0
    %282 = vmatprep.subr.mxu0 0.0
    %283 = vmatpush1.xpose.msra.mxu0 0.0
    %284 = vmatprep.subr.mxu0 0.0
    %285 = vmatpush1.xpose.msra.mxu0 0.0
    %286 = vmatprep.subr.mxu0 0.0
    %287 = vmatpush1.xpose.msra.mxu0 0.0
    %288 = vmatprep.subr.mxu0 0.0
    %289 = vmatpush1.xpose.msra.mxu0 0.0
    %290 = vmatprep.subr.mxu0 0.0
    %291 = vmatpush1.xpose.msra.mxu0 0.0
    %292 = vmatprep.subr.mxu0 0.0
    %293 = vmatpush1.xpose.msra.mxu0 0.0
    %294 = vmatprep.subr.mxu0 0.0
    %295 = vmatpush1.xpose.msra.mxu0 0.0
    %296 = vmatprep.subr.mxu0 0.0
    %297 = vmatpush1.xpose.msra.mxu0 0.0
    %298 = vmatprep.subr.mxu0 0.0
    %299 = vmatpush1.xpose.msra.mxu0 0.0
    %300 = vmatprep.subr.mxu0 0.0
    %301 = vmatpush1.xpose.msra.mxu0 0.0
    %302 = vmatprep.subr.mxu0 0.0
    %303 = vmatpush1.xpose.msra.mxu0 0.0
    %304 = vmatprep.subr.mxu0 0.0
    %305 = vmatpush1.xpose.msra.mxu0 0.0
    %306 = vmatprep.subr.mxu0 0.0
    %307 = vmatpush1.xpose.msra.mxu0 0.0
    %308 = vmatprep.subr.mxu0 0.0
    %309 = vmatpush1.xpose.msra.mxu0 0.0
    %310 = vmatprep.subr.mxu0 0.0
    %311 = vmatpush1.xpose.msra.mxu0 0.0
    %312 = vmatprep.subr.mxu0 0.0
    %313 = vmatpush1.xpose.msra.mxu0 0.0
    %314 = vmatprep.subr.mxu0 0.0
    %315 = vmatpush1.xpose.msra.mxu0 0.0
    %316 = vmatprep.subr.mxu0 0.0
    %317 = vmatpush1.xpose.msra.mxu0 0.0
    %318 = vmatprep.subr.mxu0 0.0
    %319 = vmatpush1.xpose.msra.mxu0 0.0
    %320 = vmatprep.subr.mxu0 0.0
    %321 = vmatpush1.xpose.msra.mxu0 0.0
    %322 = vmatprep.subr.mxu0 0.0
    %323 = vmatpush1.xpose.msra.mxu0 0.0
    %324 = vmatprep.subr.mxu0 0.0
    %325 = vmatpush1.xpose.msra.mxu0 0.0
    %326 = vmatprep.subr.mxu0 0.0
    %327 = vmatpush1.xpose.msra.mxu0 0.0
    %328 = vmatprep.subr.mxu0 0.0
    %329 = vmatpush1.xpose.msra.mxu0 0.0
    %330 = vmatprep.mubr.f32.mxu0 0.0
    %v331 = vand.u32 %v36, 4294901760
    %v332 = vsub.f32 %v36, %v331
    %v333 = vand.u32 %v332, 4294901760
    %334 = vmatmul.mubr.f32.gmra.mrb[0].mxu0 %v333
    %v335 = vpop.f32.mrb[0].mxu0
    %v336 = vadd.f32 %v262, %v335
    %v337 = vpop.f32.mrb[0].mxu0
    %338 = vdwg.mxu0
    %339 = vmatprep.subr.mxu0 0.0
    %v340 = vand.u32 %v34, 4294901760
    %v341 = vsub.f32 %v34, %v340
    %v342 = vand.u32 %v341, 4294901760
    %343 = vmatpush1.xpose.msra.mxu0 %v342
    %344 = vmatprep.subr.mxu0 0.0
    %345 = vmatpush1.xpose.msra.mxu0 0.0
    %346 = vmatprep.subr.mxu0 0.0
    %347 = vmatpush1.xpose.msra.mxu0 0.0
    %348 = vmatprep.subr.mxu0 0.0
    %349 = vmatpush1.xpose.msra.mxu0 0.0
    %350 = vmatprep.subr.mxu0 0.0
    %351 = vmatpush1.xpose.msra.mxu0 0.0
    %352 = vmatprep.subr.mxu0 0.0
    %353 = vmatpush1.xpose.msra.mxu0 0.0
    %354 = vmatprep.subr.mxu0 0.0
    %355 = vmatpush1.xpose.msra.mxu0 0.0
    %356 = vmatprep.subr.mxu0 0.0
    %357 = vmatpush1.xpose.msra.mxu0 0.0
    %358 = vmatprep.subr.mxu0 0.0
    %359 = vmatpush1.xpose.msra.mxu0 0.0
    %360 = vmatprep.subr.mxu0 0.0
    %361 = vmatpush1.xpose.msra.mxu0 0.0
    %362 = vmatprep.subr.mxu0 0.0
    %363 = vmatpush1.xpose.msra.mxu0 0.0
    %364 = vmatprep.subr.mxu0 0.0
    %365 = vmatpush1.xpose.msra.mxu0 0.0
    %366 = vmatprep.subr.mxu0 0.0
    %367 = vmatpush1.xpose.msra.mxu0 0.0
    %368 = vmatprep.subr.mxu0 0.0
    %369 = vmatpush1.xpose.msra.mxu0 0.0
    %370 = vmatprep.subr.mxu0 0.0
    %371 = vmatpush1.xpose.msra.mxu0 0.0
    %372 = vmatprep.subr.mxu0 0.0
    %373 = vmatpush1.xpose.msra.mxu0 0.0
    %374 = vmatprep.subr.mxu0 0.0
    %375 = vmatpush1.xpose.msra.mxu0 0.0
    %376 = vmatprep.subr.mxu0 0.0
    %377 = vmatpush1.xpose.msra.mxu0 0.0
    %378 = vmatprep.subr.mxu0 0.0
    %379 = vmatpush1.xpose.msra.mxu0 0.0
    %380 = vmatprep.subr.mxu0 0.0
    %381 = vmatpush1.xpose.msra.mxu0 0.0
    %382 = vmatprep.subr.mxu0 0.0
    %383 = vmatpush1.xpose.msra.mxu0 0.0
    %384 = vmatprep.subr.mxu0 0.0
    %385 = vmatpush1.xpose.msra.mxu0 0.0
    %386 = vmatprep.subr.mxu0 0.0
    %387 = vmatpush1.xpose.msra.mxu0 0.0
    %388 = vmatprep.subr.mxu0 0.0
    %389 = vmatpush1.xpose.msra.mxu0 0.0
    %390 = vmatprep.subr.mxu0 0.0
    %391 = vmatpush1.xpose.msra.mxu0 0.0
    %392 = vmatprep.subr.mxu0 0.0
    %393 = vmatpush1.xpose.msra.mxu0 0.0
    %394 = vmatprep.subr.mxu0 0.0
    %395 = vmatpush1.xpose.msra.mxu0 0.0
    %396 = vmatprep.subr.mxu0 0.0
    %397 = vmatpush1.xpose.msra.mxu0 0.0
    %398 = vmatprep.subr.mxu0 0.0
    %399 = vmatpush1.xpose.msra.mxu0 0.0
    %400 = vmatprep.subr.mxu0 0.0
    %401 = vmatpush1.xpose.msra.mxu0 0.0
    %402 = vmatprep.subr.mxu0 0.0
    %403 = vmatpush1.xpose.msra.mxu0 0.0
    %404 = vmatprep.subr.mxu0 0.0
    %405 = vmatpush1.xpose.msra.mxu0 0.0
    %406 = vmatprep.mubr.f32.mxu0 0.0
    %v407 = vand.u32 %v36, 4294901760
    %408 = vmatmul.mubr.f32.gmra.mrb[0].mxu0 %v407
    %v409 = vpop.f32.mrb[0].mxu0
    %v410 = vadd.f32 %v336, %v409
    %v411 = vpop.f32.mrb[0].mxu0
    %412 = vdwg.mxu0
    %413 = vmatprep.subr.mxu0 0.0
    %v414 = vand.u32 %v34, 4294901760
    %415 = vmatpush1.xpose.msra.mxu0 %v414
    %416 = vmatprep.subr.mxu0 0.0
    %417 = vmatpush1.xpose.msra.mxu0 0.0
    %418 = vmatprep.subr.mxu0 0.0
    %419 = vmatpush1.xpose.msra.mxu0 0.0
    %420 = vmatprep.subr.mxu0 0.0
    %421 = vmatpush1.xpose.msra.mxu0 0.0
    %422 = vmatprep.subr.mxu0 0.0
    %423 = vmatpush1.xpose.msra.mxu0 0.0
    %424 = vmatprep.subr.mxu0 0.0
    %425 = vmatpush1.xpose.msra.mxu0 0.0
    %426 = vmatprep.subr.mxu0 0.0
    %427 = vmatpush1.xpose.msra.mxu0 0.0
    %428 = vmatprep.subr.mxu0 0.0
    %429 = vmatpush1.xpose.msra.mxu0 0.0
    %430 = vmatprep.subr.mxu0 0.0
    %431 = vmatpush1.xpose.msra.mxu0 0.0
    %432 = vmatprep.subr.mxu0 0.0
    %433 = vmatpush1.xpose.msra.mxu0 0.0
    %434 = vmatprep.subr.mxu0 0.0
    %435 = vmatpush1.xpose.msra.mxu0 0.0
    %436 = vmatprep.subr.mxu0 0.0
    %437 = vmatpush1.xpose.msra.mxu0 0.0
    %438 = vmatprep.subr.mxu0 0.0
    %439 = vmatpush1.xpose.msra.mxu0 0.0
    %440 = vmatprep.subr.mxu0 0.0
    %441 = vmatpush1.xpose.msra.mxu0 0.0
    %442 = vmatprep.subr.mxu0 0.0
    %443 = vmatpush1.xpose.msra.mxu0 0.0
    %444 = vmatprep.subr.mxu0 0.0
    %445 = vmatpush1.xpose.msra.mxu0 0.0
    %446 = vmatprep.subr.mxu0 0.0
    %447 = vmatpush1.xpose.msra.mxu0 0.0
    %448 = vmatprep.subr.mxu0 0.0
    %449 = vmatpush1.xpose.msra.mxu0 0.0
    %450 = vmatprep.subr.mxu0 0.0
    %451 = vmatpush1.xpose.msra.mxu0 0.0
    %452 = vmatprep.subr.mxu0 0.0
    %453 = vmatpush1.xpose.msra.mxu0 0.0
    %454 = vmatprep.subr.mxu0 0.0
    %455 = vmatpush1.xpose.msra.mxu0 0.0
    %456 = vmatprep.subr.mxu0 0.0
    %457 = vmatpush1.xpose.msra.mxu0 0.0
    %458 = vmatprep.subr.mxu0 0.0
    %459 = vmatpush1.xpose.msra.mxu0 0.0
    %460 = vmatprep.subr.mxu0 0.0
    %461 = vmatpush1.xpose.msra.mxu0 0.0
    %462 = vmatprep.subr.mxu0 0.0
    %463 = vmatpush1.xpose.msra.mxu0 0.0
    %464 = vmatprep.subr.mxu0 0.0
    %465 = vmatpush1.xpose.msra.mxu0 0.0
    %466 = vmatprep.subr.mxu0 0.0
    %467 = vmatpush1.xpose.msra.mxu0 0.0
    %468 = vmatprep.subr.mxu0 0.0
    %469 = vmatpush1.xpose.msra.mxu0 0.0
    %470 = vmatprep.subr.mxu0 0.0
    %471 = vmatpush1.xpose.msra.mxu0 0.0
    %472 = vmatprep.subr.mxu0 0.0
    %473 = vmatpush1.xpose.msra.mxu0 0.0
    %474 = vmatprep.subr.mxu0 0.0
    %475 = vmatpush1.xpose.msra.mxu0 0.0
    %476 = vmatprep.subr.mxu0 0.0
    %477 = vmatpush1.xpose.msra.mxu0 0.0
    %478 = vmatprep.mubr.f32.mxu0 0.0
    %v479 = vand.u32 %v36, 4294901760
    %480 = vmatmul.mubr.f32.gmra.mrb[0].mxu0 %v479
    %v481 = vpop.f32.mrb[0].mxu0
    %v482 = vadd.f32 %v410, %v481
    %v483 = vpop.f32.mrb[0].mxu0
    %484 = vdwg.mxu0
    %485 = vmatprep.subr.mxu0 0.0
    %v486 = vand.u32 %v35, 4294901760
    %487 = vmatpush1.xpose.msra.mxu0 %v486
    %488 = vmatprep.subr.mxu0 0.0
    %489 = vmatpush1.xpose.msra.mxu0 0.0
    %490 = vmatprep.subr.mxu0 0.0
    %491 = vmatpush1.xpose.msra.mxu0 0.0
    %492 = vmatprep.subr.mxu0 0.0
    %493 = vmatpush1.xpose.msra.mxu0 0.0
    %494 = vmatprep.subr.mxu0 0.0
    %495 = vmatpush1.xpose.msra.mxu0 0.0
    %496 = vmatprep.subr.mxu0 0.0
    %497 = vmatpush1.xpose.msra.mxu0 0.0
    %498 = vmatprep.subr.mxu0 0.0
    %499 = vmatpush1.xpose.msra.mxu0 0.0
    %500 = vmatprep.subr.mxu0 0.0
    %501 = vmatpush1.xpose.msra.mxu0 0.0
    %502 = vmatprep.subr.mxu0 0.0
    %503 = vmatpush1.xpose.msra.mxu0 0.0
    %504 = vmatprep.subr.mxu0 0.0
    %505 = vmatpush1.xpose.msra.mxu0 0.0
    %506 = vmatprep.subr.mxu0 0.0
    %507 = vmatpush1.xpose.msra.mxu0 0.0
    %508 = vmatprep.subr.mxu0 0.0
    %509 = vmatpush1.xpose.msra.mxu0 0.0
    %510 = vmatprep.subr.mxu0 0.0
    %511 = vmatpush1.xpose.msra.mxu0 0.0
    %512 = vmatprep.subr.mxu0 0.0
    %513 = vmatpush1.xpose.msra.mxu0 0.0
    %514 = vmatprep.subr.mxu0 0.0
    %515 = vmatpush1.xpose.msra.mxu0 0.0
    %516 = vmatprep.subr.mxu0 0.0
    %517 = vmatpush1.xpose.msra.mxu0 0.0
    %518 = vmatprep.subr.mxu0 0.0
    %519 = vmatpush1.xpose.msra.mxu0 0.0
    %520 = vmatprep.subr.mxu0 0.0
    %521 = vmatpush1.xpose.msra.mxu0 0.0
    %522 = vmatprep.subr.mxu0 0.0
    %523 = vmatpush1.xpose.msra.mxu0 0.0
    %524 = vmatprep.subr.mxu0 0.0
    %525 = vmatpush1.xpose.msra.mxu0 0.0
    %526 = vmatprep.subr.mxu0 0.0
    %527 = vmatpush1.xpose.msra.mxu0 0.0
    %528 = vmatprep.subr.mxu0 0.0
    %529 = vmatpush1.xpose.msra.mxu0 0.0
    %530 = vmatprep.subr.mxu0 0.0
    %531 = vmatpush1.xpose.msra.mxu0 0.0
    %532 = vmatprep.subr.mxu0 0.0
    %533 = vmatpush1.xpose.msra.mxu0 0.0
    %534 = vmatprep.subr.mxu0 0.0
    %535 = vmatpush1.xpose.msra.mxu0 0.0
    %536 = vmatprep.subr.mxu0 0.0
    %537 = vmatpush1.xpose.msra.mxu0 0.0
    %538 = vmatprep.subr.mxu0 0.0
    %539 = vmatpush1.xpose.msra.mxu0 0.0
    %540 = vmatprep.subr.mxu0 0.0
    %541 = vmatpush1.xpose.msra.mxu0 0.0
    %542 = vmatprep.subr.mxu0 0.0
    %543 = vmatpush1.xpose.msra.mxu0 0.0
    %544 = vmatprep.subr.mxu0 0.0
    %545 = vmatpush1.xpose.msra.mxu0 0.0
    %546 = vmatprep.subr.mxu0 0.0
    %547 = vmatpush1.xpose.msra.mxu0 0.0
    %548 = vmatprep.subr.mxu0 0.0
    %549 = vmatpush1.xpose.msra.mxu0 0.0
    %550 = vmatprep.mubr.f32.mxu0 0.0
    %v551 = vand.u32 %v37, 4294901760
    %v552 = vsub.f32 %v37, %v551
    %v553 = vand.u32 %v552, 4294901760
    %v554 = vsub.f32 %v552, %v553
    %v555 = vand.u32 %v554, 4294901760
    %556 = vmatmul.mubr.f32.gmra.mrb[0].mxu0 %v555
    %v557 = vpop.f32.mrb[0].mxu0
    %v558 = vadd.f32 %v38, %v557
    %v559 = vpop.f32.mrb[0].mxu0
    %560 = vdwg.mxu0
    %561 = vmatprep.subr.mxu0 0.0
    %v562 = vand.u32 %v35, 4294901760
    %v563 = vsub.f32 %v35, %v562
    %v564 = vand.u32 %v563, 4294901760
    %v565 = vsub.f32 %v563, %v564
    %v566 = vand.u32 %v565, 4294901760
    %567 = vmatpush1.xpose.msra.mxu0 %v566
    %568 = vmatprep.subr.mxu0 0.0
    %569 = vmatpush1.xpose.msra.mxu0 0.0
    %570 = vmatprep.subr.mxu0 0.0
    %571 = vmatpush1.xpose.msra.mxu0 0.0
    %572 = vmatprep.subr.mxu0 0.0
    %573 = vmatpush1.xpose.msra.mxu0 0.0
    %574 = vmatprep.subr.mxu0 0.0
    %575 = vmatpush1.xpose.msra.mxu0 0.0
    %576 = vmatprep.subr.mxu0 0.0
    %577 = vmatpush1.xpose.msra.mxu0 0.0
    %578 = vmatprep.subr.mxu0 0.0
    %579 = vmatpush1.xpose.msra.mxu0 0.0
    %580 = vmatprep.subr.mxu0 0.0
    %581 = vmatpush1.xpose.msra.mxu0 0.0
    %582 = vmatprep.subr.mxu0 0.0
    %583 = vmatpush1.xpose.msra.mxu0 0.0
    %584 = vmatprep.subr.mxu0 0.0
    %585 = vmatpush1.xpose.msra.mxu0 0.0
    %586 = vmatprep.subr.mxu0 0.0
    %587 = vmatpush1.xpose.msra.mxu0 0.0
    %588 = vmatprep.subr.mxu0 0.0
    %589 = vmatpush1.xpose.msra.mxu0 0.0
    %590 = vmatprep.subr.mxu0 0.0
    %591 = vmatpush1.xpose.msra.mxu0 0.0
    %592 = vmatprep.subr.mxu0 0.0
    %593 = vmatpush1.xpose.msra.mxu0 0.0
    %594 = vmatprep.subr.mxu0 0.0
    %595 = vmatpush1.xpose.msra.mxu0 0.0
    %596 = vmatprep.subr.mxu0 0.0
    %597 = vmatpush1.xpose.msra.mxu0 0.0
    %598 = vmatprep.subr.mxu0 0.0
    %599 = vmatpush1.xpose.msra.mxu0 0.0
    %600 = vmatprep.subr.mxu0 0.0
    %601 = vmatpush1.xpose.msra.mxu0 0.0
    %602 = vmatprep.subr.mxu0 0.0
    %603 = vmatpush1.xpose.msra.mxu0 0.0
    %604 = vmatprep.subr.mxu0 0.0
    %605 = vmatpush1.xpose.msra.mxu0 0.0
    %606 = vmatprep.subr.mxu0 0.0
    %607 = vmatpush1.xpose.msra.mxu0 0.0
    %608 = vmatprep.subr.mxu0 0.0
    %609 = vmatpush1.xpose.msra.mxu0 0.0
    %610 = vmatprep.subr.mxu0 0.0
    %611 = vmatpush1.xpose.msra.mxu0 0.0
    %612 = vmatprep.subr.mxu0 0.0
    %613 = vmatpush1.xpose.msra.mxu0 0.0
    %614 = vmatprep.subr.mxu0 0.0
    %615 = vmatpush1.xpose.msra.mxu0 0.0
    %616 = vmatprep.subr.mxu0 0.0
    %617 = vmatpush1.xpose.msra.mxu0 0.0
    %618 = vmatprep.subr.mxu0 0.0
    %619 = vmatpush1.xpose.msra.mxu0 0.0
    %620 = vmatprep.subr.mxu0 0.0
    %621 = vmatpush1.xpose.msra.mxu0 0.0
    %622 = vmatprep.subr.mxu0 0.0
    %623 = vmatpush1.xpose.msra.mxu0 0.0
    %624 = vmatprep.subr.mxu0 0.0
    %625 = vmatpush1.xpose.msra.mxu0 0.0
    %626 = vmatprep.subr.mxu0 0.0
    %627 = vmatpush1.xpose.msra.mxu0 0.0
    %628 = vmatprep.subr.mxu0 0.0
    %629 = vmatpush1.xpose.msra.mxu0 0.0
    %630 = vmatprep.mubr.f32.mxu0 0.0
    %v631 = vand.u32 %v37, 4294901760
    %632 = vmatmul.mubr.f32.gmra.mrb[0].mxu0 %v631
    %v633 = vpop.f32.mrb[0].mxu0
    %v634 = vadd.f32 %v558, %v633
    %v635 = vpop.f32.mrb[0].mxu0
    %636 = vdwg.mxu0
    %637 = vmatprep.subr.mxu0 0.0
    %v638 = vand.u32 %v35, 4294901760
    %v639 = vsub.f32 %v35, %v638
    %640 = vmatpush1.xpose.msra.mxu0 %v639
    %641 = vmatprep.subr.mxu0 0.0
    %642 = vmatpush1.xpose.msra.mxu0 0.0
    %643 = vmatprep.subr.mxu0 0.0
    %644 = vmatpush1.xpose.msra.mxu0 0.0
    %645 = vmatprep.subr.mxu0 0.0
    %646 = vmatpush1.xpose.msra.mxu0 0.0
    %647 = vmatprep.subr.mxu0 0.0
    %648 = vmatpush1.xpose.msra.mxu0 0.0
    %649 = vmatprep.subr.mxu0 0.0
    %650 = vmatpush1.xpose.msra.mxu0 0.0
    %651 = vmatprep.subr.mxu0 0.0
    %652 = vmatpush1.xpose.msra.mxu0 0.0
    %653 = vmatprep.subr.mxu0 0.0
    %654 = vmatpush1.xpose.msra.mxu0 0.0
    %655 = vmatprep.subr.mxu0 0.0
    %656 = vmatpush1.xpose.msra.mxu0 0.0
    %657 = vmatprep.subr.mxu0 0.0
    %658 = vmatpush1.xpose.msra.mxu0 0.0
    %659 = vmatprep.subr.mxu0 0.0
    %660 = vmatpush1.xpose.msra.mxu0 0.0
    %661 = vmatprep.subr.mxu0 0.0
    %662 = vmatpush1.xpose.msra.mxu0 0.0
    %663 = vmatprep.subr.mxu0 0.0
    %664 = vmatpush1.xpose.msra.mxu0 0.0
    %665 = vmatprep.subr.mxu0 0.0
    %666 = vmatpush1.xpose.msra.mxu0 0.0
    %667 = vmatprep.subr.mxu0 0.0
    %668 = vmatpush1.xpose.msra.mxu0 0.0
    %669 = vmatprep.subr.mxu0 0.0
    %670 = vmatpush1.xpose.msra.mxu0 0.0
    %671 = vmatprep.subr.mxu0 0.0
    %672 = vmatpush1.xpose.msra.mxu0 0.0
    %673 = vmatprep.subr.mxu0 0.0
    %674 = vmatpush1.xpose.msra.mxu0 0.0
    %675 = vmatprep.subr.mxu0 0.0
    %676 = vmatpush1.xpose.msra.mxu0 0.0
    %677 = vmatprep.subr.mxu0 0.0
    %678 = vmatpush1.xpose.msra.mxu0 0.0
    %679 = vmatprep.subr.mxu0 0.0
    %680 = vmatpush1.xpose.msra.mxu0 0.0
    %681 = vmatprep.subr.mxu0 0.0
    %682 = vmatpush1.xpose.msra.mxu0 0.0
    %683 = vmatprep.subr.mxu0 0.0
    %684 = vmatpush1.xpose.msra.mxu0 0.0
    %685 = vmatprep.subr.mxu0 0.0
    %686 = vmatpush1.xpose.msra.mxu0 0.0
    %687 = vmatprep.subr.mxu0 0.0
    %688 = vmatpush1.xpose.msra.mxu0 0.0
    %689 = vmatprep.subr.mxu0 0.0
    %690 = vmatpush1.xpose.msra.mxu0 0.0
    %691 = vmatprep.subr.mxu0 0.0
    %692 = vmatpush1.xpose.msra.mxu0 0.0
    %693 = vmatprep.subr.mxu0 0.0
    %694 = vmatpush1.xpose.msra.mxu0 0.0
    %695 = vmatprep.subr.mxu0 0.0
    %696 = vmatpush1.xpose.msra.mxu0 0.0
    %697 = vmatprep.subr.mxu0 0.0
    %698 = vmatpush1.xpose.msra.mxu0 0.0
    %699 = vmatprep.subr.mxu0 0.0
    %700 = vmatpush1.xpose.msra.mxu0 0.0
    %701 = vmatprep.subr.mxu0 0.0
    %702 = vmatpush1.xpose.msra.mxu0 0.0
    %703 = vmatprep.mubr.f32.mxu0 0.0
    %v704 = vand.u32 %v37, 4294901760
    %v705 = vsub.f32 %v37, %v704
    %706 = vmatmul.mubr.f32.gmra.mrb[0].mxu0 %v705
    %v707 = vpop.f32.mrb[0].mxu0
    %v708 = vadd.f32 %v634, %v707
    %v709 = vpop.f32.mrb[0].mxu0
    %710 = vdwg.mxu0
    %711 = vmatprep.subr.mxu0 0.0
    %v712 = vand.u32 %v35, 4294901760
    %713 = vmatpush1.xpose.msra.mxu0 %v712
    %714 = vmatprep.subr.mxu0 0.0
    %715 = vmatpush1.xpose.msra.mxu0 0.0
    %716 = vmatprep.subr.mxu0 0.0
    %717 = vmatpush1.xpose.msra.mxu0 0.0
    %718 = vmatprep.subr.mxu0 0.0
    %719 = vmatpush1.xpose.msra.mxu0 0.0
    %720 = vmatprep.subr.mxu0 0.0
    %721 = vmatpush1.xpose.msra.mxu0 0.0
    %722 = vmatprep.subr.mxu0 0.0
    %723 = vmatpush1.xpose.msra.mxu0 0.0
    %724 = vmatprep.subr.mxu0 0.0
    %725 = vmatpush1.xpose.msra.mxu0 0.0
    %726 = vmatprep.subr.mxu0 0.0
    %727 = vmatpush1.xpose.msra.mxu0 0.0
    %728 = vmatprep.subr.mxu0 0.0
    %729 = vmatpush1.xpose.msra.mxu0 0.0
    %730 = vmatprep.subr.mxu0 0.0
    %731 = vmatpush1.xpose.msra.mxu0 0.0
    %732 = vmatprep.subr.mxu0 0.0
    %733 = vmatpush1.xpose.msra.mxu0 0.0
    %734 = vmatprep.subr.mxu0 0.0
    %735 = vmatpush1.xpose.msra.mxu0 0.0
    %736 = vmatprep.subr.mxu0 0.0
    %737 = vmatpush1.xpose.msra.mxu0 0.0
    %738 = vmatprep.subr.mxu0 0.0
    %739 = vmatpush1.xpose.msra.mxu0 0.0
    %740 = vmatprep.subr.mxu0 0.0
    %741 = vmatpush1.xpose.msra.mxu0 0.0
    %742 = vmatprep.subr.mxu0 0.0
    %743 = vmatpush1.xpose.msra.mxu0 0.0
    %744 = vmatprep.subr.mxu0 0.0
    %745 = vmatpush1.xpose.msra.mxu0 0.0
    %746 = vmatprep.subr.mxu0 0.0
    %747 = vmatpush1.xpose.msra.mxu0 0.0
    %748 = vmatprep.subr.mxu0 0.0
    %749 = vmatpush1.xpose.msra.mxu0 0.0
    %750 = vmatprep.subr.mxu0 0.0
    %751 = vmatpush1.xpose.msra.mxu0 0.0
    %752 = vmatprep.subr.mxu0 0.0
    %753 = vmatpush1.xpose.msra.mxu0 0.0
    %754 = vmatprep.subr.mxu0 0.0
    %755 = vmatpush1.xpose.msra.mxu0 0.0
    %756 = vmatprep.subr.mxu0 0.0
    %757 = vmatpush1.xpose.msra.mxu0 0.0
    %758 = vmatprep.subr.mxu0 0.0
    %759 = vmatpush1.xpose.msra.mxu0 0.0
    %760 = vmatprep.subr.mxu0 0.0
    %761 = vmatpush1.xpose.msra.mxu0 0.0
    %762 = vmatprep.subr.mxu0 0.0
    %763 = vmatpush1.xpose.msra.mxu0 0.0
    %764 = vmatprep.subr.mxu0 0.0
    %765 = vmatpush1.xpose.msra.mxu0 0.0
    %766 = vmatprep.subr.mxu0 0.0
    %767 = vmatpush1.xpose.msra.mxu0 0.0
    %768 = vmatprep.subr.mxu0 0.0
    %769 = vmatpush1.xpose.msra.mxu0 0.0
    %770 = vmatprep.subr.mxu0 0.0
    %771 = vmatpush1.xpose.msra.mxu0 0.0
    %772 = vmatprep.subr.mxu0 0.0
    %773 = vmatpush1.xpose.msra.mxu0 0.0
    %774 = vmatprep.subr.mxu0 0.0
    %775 = vmatpush1.xpose.msra.mxu0 0.0
    %776 = vmatprep.mubr.f32.mxu0 0.0
    %v777 = vand.u32 %v37, 4294901760
    %v778 = vsub.f32 %v37, %v777
    %v779 = vand.u32 %v778, 4294901760
    %780 = vmatmul.mubr.f32.gmra.mrb[0].mxu0 %v779
    %v781 = vpop.f32.mrb[0].mxu0
    %v782 = vadd.f32 %v708, %v781
    %v783 = vpop.f32.mrb[0].mxu0
    %784 = vdwg.mxu0
    %785 = vmatprep.subr.mxu0 0.0
    %v786 = vand.u32 %v35, 4294901760
    %v787 = vsub.f32 %v35, %v786
    %v788 = vand.u32 %v787, 4294901760
    %789 = vmatpush1.xpose.msra.mxu0 %v788
    %790 = vmatprep.subr.mxu0 0.0
    %791 = vmatpush1.xpose.msra.mxu0 0.0
    %792 = vmatprep.subr.mxu0 0.0
    %793 = vmatpush1.xpose.msra.mxu0 0.0
    %794 = vmatprep.subr.mxu0 0.0
    %795 = vmatpush1.xpose.msra.mxu0 0.0
    %796 = vmatprep.subr.mxu0 0.0
    %797 = vmatpush1.xpose.msra.mxu0 0.0
    %798 = vmatprep.subr.mxu0 0.0
    %799 = vmatpush1.xpose.msra.mxu0 0.0
    %800 = vmatprep.subr.mxu0 0.0
    %801 = vmatpush1.xpose.msra.mxu0 0.0
    %802 = vmatprep.subr.mxu0 0.0
    %803 = vmatpush1.xpose.msra.mxu0 0.0
    %804 = vmatprep.subr.mxu0 0.0
    %805 = vmatpush1.xpose.msra.mxu0 0.0
    %806 = vmatprep.subr.mxu0 0.0
    %807 = vmatpush1.xpose.msra.mxu0 0.0
    %808 = vmatprep.subr.mxu0 0.0
    %809 = vmatpush1.xpose.msra.mxu0 0.0
    %810 = vmatprep.subr.mxu0 0.0
    %811 = vmatpush1.xpose.msra.mxu0 0.0
    %812 = vmatprep.subr.mxu0 0.0
    %813 = vmatpush1.xpose.msra.mxu0 0.0
    %814 = vmatprep.subr.mxu0 0.0
    %815 = vmatpush1.xpose.msra.mxu0 0.0
    %816 = vmatprep.subr.mxu0 0.0
    %817 = vmatpush1.xpose.msra.mxu0 0.0
    %818 = vmatprep.subr.mxu0 0.0
    %819 = vmatpush1.xpose.msra.mxu0 0.0
    %820 = vmatprep.subr.mxu0 0.0
    %821 = vmatpush1.xpose.msra.mxu0 0.0
    %822 = vmatprep.subr.mxu0 0.0
    %823 = vmatpush1.xpose.msra.mxu0 0.0
    %824 = vmatprep.subr.mxu0 0.0
    %825 = vmatpush1.xpose.msra.mxu0 0.0
    %826 = vmatprep.subr.mxu0 0.0
    %827 = vmatpush1.xpose.msra.mxu0 0.0
    %828 = vmatprep.subr.mxu0 0.0
    %829 = vmatpush1.xpose.msra.mxu0 0.0
    %830 = vmatprep.subr.mxu0 0.0
    %831 = vmatpush1.xpose.msra.mxu0 0.0
    %832 = vmatprep.subr.mxu0 0.0
    %833 = vmatpush1.xpose.msra.mxu0 0.0
    %834 = vmatprep.subr.mxu0 0.0
    %835 = vmatpush1.xpose.msra.mxu0 0.0
    %836 = vmatprep.subr.mxu0 0.0
    %837 = vmatpush1.xpose.msra.mxu0 0.0
    %838 = vmatprep.subr.mxu0 0.0
    %839 = vmatpush1.xpose.msra.mxu0 0.0
    %840 = vmatprep.subr.mxu0 0.0
    %841 = vmatpush1.xpose.msra.mxu0 0.0
    %842 = vmatprep.subr.mxu0 0.0
    %843 = vmatpush1.xpose.msra.mxu0 0.0
    %844 = vmatprep.subr.mxu0 0.0
    %845 = vmatpush1.xpose.msra.mxu0 0.0
    %846 = vmatprep.subr.mxu0 0.0
    %847 = vmatpush1.xpose.msra.mxu0 0.0
    %848 = vmatprep.subr.mxu0 0.0
    %849 = vmatpush1.xpose.msra.mxu0 0.0
    %850 = vmatprep.subr.mxu0 0.0
    %851 = vmatpush1.xpose.msra.mxu0 0.0
    %852 = vmatprep.mubr.f32.mxu0 0.0
    %v853 = vand.u32 %v37, 4294901760
    %854 = vmatmul.mubr.f32.gmra.mrb[0].mxu0 %v853
    %v855 = vpop.f32.mrb[0].mxu0
    %v856 = vadd.f32 %v782, %v855
    %v857 = vpop.f32.mrb[0].mxu0
    %858 = vdwg.mxu0
    %859 = vmatprep.subr.mxu0 0.0
    %v860 = vand.u32 %v35, 4294901760
    %861 = vmatpush1.xpose.msra.mxu0 %v860
    %862 = vmatprep.subr.mxu0 0.0
    %863 = vmatpush1.xpose.msra.mxu0 0.0
    %864 = vmatprep.subr.mxu0 0.0
    %865 = vmatpush1.xpose.msra.mxu0 0.0
    %866 = vmatprep.subr.mxu0 0.0
    %867 = vmatpush1.xpose.msra.mxu0 0.0
    %868 = vmatprep.subr.mxu0 0.0
    %869 = vmatpush1.xpose.msra.mxu0 0.0
    %870 = vmatprep.subr.mxu0 0.0
    %871 = vmatpush1.xpose.msra.mxu0 0.0
    %872 = vmatprep.subr.mxu0 0.0
    %873 = vmatpush1.xpose.msra.mxu0 0.0
    %874 = vmatprep.subr.mxu0 0.0
    %875 = vmatpush1.xpose.msra.mxu0 0.0
    %876 = vmatprep.subr.mxu0 0.0
    %877 = vmatpush1.xpose.msra.mxu0 0.0
    %878 = vmatprep.subr.mxu0 0.0
    %879 = vmatpush1.xpose.msra.mxu0 0.0
    %880 = vmatprep.subr.mxu0 0.0
    %881 = vmatpush1.xpose.msra.mxu0 0.0
    %882 = vmatprep.subr.mxu0 0.0
    %883 = vmatpush1.xpose.msra.mxu0 0.0
    %884 = vmatprep.subr.mxu0 0.0
    %885 = vmatpush1.xpose.msra.mxu0 0.0
    %886 = vmatprep.subr.mxu0 0.0
    %887 = vmatpush1.xpose.msra.mxu0 0.0
    %888 = vmatprep.subr.mxu0 0.0
    %889 = vmatpush1.xpose.msra.mxu0 0.0
    %890 = vmatprep.subr.mxu0 0.0
    %891 = vmatpush1.xpose.msra.mxu0 0.0
    %892 = vmatprep.subr.mxu0 0.0
    %893 = vmatpush1.xpose.msra.mxu0 0.0
    %894 = vmatprep.subr.mxu0 0.0
    %895 = vmatpush1.xpose.msra.mxu0 0.0
    %896 = vmatprep.subr.mxu0 0.0
    %897 = vmatpush1.xpose.msra.mxu0 0.0
    %898 = vmatprep.subr.mxu0 0.0
    %899 = vmatpush1.xpose.msra.mxu0 0.0
    %900 = vmatprep.subr.mxu0 0.0
    %901 = vmatpush1.xpose.msra.mxu0 0.0
    %902 = vmatprep.subr.mxu0 0.0
    %903 = vmatpush1.xpose.msra.mxu0 0.0
    %904 = vmatprep.subr.mxu0 0.0
    %905 = vmatpush1.xpose.msra.mxu0 0.0
    %906 = vmatprep.subr.mxu0 0.0
    %907 = vmatpush1.xpose.msra.mxu0 0.0
    %908 = vmatprep.subr.mxu0 0.0
    %909 = vmatpush1.xpose.msra.mxu0 0.0
    %910 = vmatprep.subr.mxu0 0.0
    %911 = vmatpush1.xpose.msra.mxu0 0.0
    %912 = vmatprep.subr.mxu0 0.0
    %913 = vmatpush1.xpose.msra.mxu0 0.0
    %914 = vmatprep.subr.mxu0 0.0
    %915 = vmatpush1.xpose.msra.mxu0 0.0
    %916 = vmatprep.subr.mxu0 0.0
    %917 = vmatpush1.xpose.msra.mxu0 0.0
    %918 = vmatprep.subr.mxu0 0.0
    %919 = vmatpush1.xpose.msra.mxu0 0.0
    %920 = vmatprep.subr.mxu0 0.0
    %921 = vmatpush1.xpose.msra.mxu0 0.0
    %922 = vmatprep.subr.mxu0 0.0
    %923 = vmatpush1.xpose.msra.mxu0 0.0
    %924 = vmatprep.mubr.f32.mxu0 0.0
    %v925 = vand.u32 %v37, 4294901760
    %926 = vmatmul.mubr.f32.gmra.mrb[0].mxu0 %v925
    %v927 = vpop.f32.mrb[0].mxu0
    %v928 = vadd.f32 %v856, %v927
    %v929 = vpop.f32.mrb[0].mxu0
    %930 = vdwg.mxu0
    %v931 = vld [vmem:[%s3] sm:$0x3]
    %v932 = vld [vmem:[%s3 + $0x2] sm:$0x3]
    %933 = vmatprep.subr.mxu0 0.0
    %v934 = vand.u32 %v34, 4294901760
    %935 = vmatpush1.xpose.msra.mxu0 %v934
    %936 = vmatprep.subr.mxu0 0.0
    %937 = vmatpush1.xpose.msra.mxu0 0.0
    %938 = vmatprep.subr.mxu0 0.0
    %939 = vmatpush1.xpose.msra.mxu0 0.0
    %940 = vmatprep.subr.mxu0 0.0
    %941 = vmatpush1.xpose.msra.mxu0 0.0
    %942 = vmatprep.subr.mxu0 0.0
    %943 = vmatpush1.xpose.msra.mxu0 0.0
    %944 = vmatprep.subr.mxu0 0.0
    %945 = vmatpush1.xpose.msra.mxu0 0.0
    %946 = vmatprep.subr.mxu0 0.0
    %947 = vmatpush1.xpose.msra.mxu0 0.0
    %948 = vmatprep.subr.mxu0 0.0
    %949 = vmatpush1.xpose.msra.mxu0 0.0
    %950 = vmatprep.subr.mxu0 0.0
    %951 = vmatpush1.xpose.msra.mxu0 0.0
    %952 = vmatprep.subr.mxu0 0.0
    %953 = vmatpush1.xpose.msra.mxu0 0.0
    %954 = vmatprep.subr.mxu0 0.0
    %955 = vmatpush1.xpose.msra.mxu0 0.0
    %956 = vmatprep.subr.mxu0 0.0
    %957 = vmatpush1.xpose.msra.mxu0 0.0
    %958 = vmatprep.subr.mxu0 0.0
    %959 = vmatpush1.xpose.msra.mxu0 0.0
    %960 = vmatprep.subr.mxu0 0.0
    %961 = vmatpush1.xpose.msra.mxu0 0.0
    %962 = vmatprep.subr.mxu0 0.0
    %963 = vmatpush1.xpose.msra.mxu0 0.0
    %964 = vmatprep.subr.mxu0 0.0
    %965 = vmatpush1.xpose.msra.mxu0 0.0
    %966 = vmatprep.subr.mxu0 0.0
    %967 = vmatpush1.xpose.msra.mxu0 0.0
    %968 = vmatprep.subr.mxu0 0.0
    %969 = vmatpush1.xpose.msra.mxu0 0.0
    %970 = vmatprep.subr.mxu0 0.0
    %971 = vmatpush1.xpose.msra.mxu0 0.0
    %972 = vmatprep.subr.mxu0 0.0
    %973 = vmatpush1.xpose.msra.mxu0 0.0
    %974 = vmatprep.subr.mxu0 0.0
    %975 = vmatpush1.xpose.msra.mxu0 0.0
    %976 = vmatprep.subr.mxu0 0.0
    %977 = vmatpush1.xpose.msra.mxu0 0.0
    %978 = vmatprep.subr.mxu0 0.0
    %979 = vmatpush1.xpose.msra.mxu0 0.0
    %980 = vmatprep.subr.mxu0 0.0
    %981 = vmatpush1.xpose.msra.mxu0 0.0
    %982 = vmatprep.subr.mxu0 0.0
    %983 = vmatpush1.xpose.msra.mxu0 0.0
    %984 = vmatprep.subr.mxu0 0.0
    %985 = vmatpush1.xpose.msra.mxu0 0.0
    %986 = vmatprep.subr.mxu0 0.0
    %987 = vmatpush1.xpose.msra.mxu0 0.0
    %988 = vmatprep.subr.mxu0 0.0
    %989 = vmatpush1.xpose.msra.mxu0 0.0
    %990 = vmatprep.subr.mxu0 0.0
    %991 = vmatpush1.xpose.msra.mxu0 0.0
    %992 = vmatprep.subr.mxu0 0.0
    %993 = vmatpush1.xpose.msra.mxu0 0.0
    %994 = vmatprep.subr.mxu0 0.0
    %995 = vmatpush1.xpose.msra.mxu0 0.0
    %996 = vmatprep.subr.mxu0 0.0
    %997 = vmatpush1.xpose.msra.mxu0 0.0
    %998 = vmatprep.mubr.f32.mxu0 0.0
    %v999 = vand.u32 %v931, 4294901760
    %v1000 = vsub.f32 %v931, %v999
    %v1001 = vand.u32 %v1000, 4294901760
    %v1002 = vsub.f32 %v1000, %v1001
    %v1003 = vand.u32 %v1002, 4294901760
    %1004 = vmatmul.mubr.f32.gmra.mrb[0].mxu0 %v1003
    %v1005 = vpop.f32.mrb[0].mxu0
    %v1006 = vadd.f32 %v38, %v1005
    %v1007 = vpop.f32.mrb[0].mxu0
    %1008 = vdwg.mxu0
    %1009 = vmatprep.subr.mxu0 0.0
    %v1010 = vand.u32 %v34, 4294901760
    %v1011 = vsub.f32 %v34, %v1010
    %v1012 = vand.u32 %v1011, 4294901760
    %v1013 = vsub.f32 %v1011, %v1012
    %v1014 = vand.u32 %v1013, 4294901760
    %1015 = vmatpush1.xpose.msra.mxu0 %v1014
    %1016 = vmatprep.subr.mxu0 0.0
    %1017 = vmatpush1.xpose.msra.mxu0 0.0
    %1018 = vmatprep.subr.mxu0 0.0
    %1019 = vmatpush1.xpose.msra.mxu0 0.0
    %1020 = vmatprep.subr.mxu0 0.0
    %1021 = vmatpush1.xpose.msra.mxu0 0.0
    %1022 = vmatprep.subr.mxu0 0.0
    %1023 = vmatpush1.xpose.msra.mxu0 0.0
    %1024 = vmatprep.subr.mxu0 0.0
    %1025 = vmatpush1.xpose.msra.mxu0 0.0
    %1026 = vmatprep.subr.mxu0 0.0
    %1027 = vmatpush1.xpose.msra.mxu0 0.0
    %1028 = vmatprep.subr.mxu0 0.0
    %1029 = vmatpush1.xpose.msra.mxu0 0.0
    %1030 = vmatprep.subr.mxu0 0.0
    %1031 = vmatpush1.xpose.msra.mxu0 0.0
    %1032 = vmatprep.subr.mxu0 0.0
    %1033 = vmatpush1.xpose.msra.mxu0 0.0
    %1034 = vmatprep.subr.mxu0 0.0
    %1035 = vmatpush1.xpose.msra.mxu0 0.0
    %1036 = vmatprep.subr.mxu0 0.0
    %1037 = vmatpush1.xpose.msra.mxu0 0.0
    %1038 = vmatprep.subr.mxu0 0.0
    %1039 = vmatpush1.xpose.msra.mxu0 0.0
    %1040 = vmatprep.subr.mxu0 0.0
    %1041 = vmatpush1.xpose.msra.mxu0 0.0
    %1042 = vmatprep.subr.mxu0 0.0
    %1043 = vmatpush1.xpose.msra.mxu0 0.0
    %1044 = vmatprep.subr.mxu0 0.0
    %1045 = vmatpush1.xpose.msra.mxu0 0.0
    %1046 = vmatprep.subr.mxu0 0.0
    %1047 = vmatpush1.xpose.msra.mxu0 0.0
    %1048 = vmatprep.subr.mxu0 0.0
    %1049 = vmatpush1.xpose.msra.mxu0 0.0
    %1050 = vmatprep.subr.mxu0 0.0
    %1051 = vmatpush1.xpose.msra.mxu0 0.0
    %1052 = vmatprep.subr.mxu0 0.0
    %1053 = vmatpush1.xpose.msra.mxu0 0.0
    %1054 = vmatprep.subr.mxu0 0.0
    %1055 = vmatpush1.xpose.msra.mxu0 0.0
    %1056 = vmatprep.subr.mxu0 0.0
    %1057 = vmatpush1.xpose.msra.mxu0 0.0
    %1058 = vmatprep.subr.mxu0 0.0
    %1059 = vmatpush1.xpose.msra.mxu0 0.0
    %1060 = vmatprep.subr.mxu0 0.0
    %1061 = vmatpush1.xpose.msra.mxu0 0.0
    %1062 = vmatprep.subr.mxu0 0.0
    %1063 = vmatpush1.xpose.msra.mxu0 0.0
    %1064 = vmatprep.subr.mxu0 0.0
    %1065 = vmatpush1.xpose.msra.mxu0 0.0
    %1066 = vmatprep.subr.mxu0 0.0
    %1067 = vmatpush1.xpose.msra.mxu0 0.0
    %1068 = vmatprep.subr.mxu0 0.0
    %1069 = vmatpush1.xpose.msra.mxu0 0.0
    %1070 = vmatprep.subr.mxu0 0.0
    %1071 = vmatpush1.xpose.msra.mxu0 0.0
    %1072 = vmatprep.subr.mxu0 0.0
    %1073 = vmatpush1.xpose.msra.mxu0 0.0
    %1074 = vmatprep.subr.mxu0 0.0
    %1075 = vmatpush1.xpose.msra.mxu0 0.0
    %1076 = vmatprep.subr.mxu0 0.0
    %1077 = vmatpush1.xpose.msra.mxu0 0.0
    %1078 = vmatprep.mubr.f32.mxu0 0.0
    %v1079 = vand.u32 %v931, 4294901760
    %1080 = vmatmul.mubr.f32.gmra.mrb[0].mxu0 %v1079
    %v1081 = vpop.f32.mrb[0].mxu0
    %v1082 = vadd.f32 %v1006, %v1081
    %v1083 = vpop.f32.mrb[0].mxu0
    %1084 = vdwg.mxu0
    %1085 = vmatprep.subr.mxu0 0.0
    %v1086 = vand.u32 %v34, 4294901760
    %v1087 = vsub.f32 %v34, %v1086
    %1088 = vmatpush1.xpose.msra.mxu0 %v1087
    %1089 = vmatprep.subr.mxu0 0.0
    %1090 = vmatpush1.xpose.msra.mxu0 0.0
    %1091 = vmatprep.subr.mxu0 0.0
    %1092 = vmatpush1.xpose.msra.mxu0 0.0
    %1093 = vmatprep.subr.mxu0 0.0
    %1094 = vmatpush1.xpose.msra.mxu0 0.0
    %1095 = vmatprep.subr.mxu0 0.0
    %1096 = vmatpush1.xpose.msra.mxu0 0.0
    %1097 = vmatprep.subr.mxu0 0.0
    %1098 = vmatpush1.xpose.msra.mxu0 0.0
    %1099 = vmatprep.subr.mxu0 0.0
    %1100 = vmatpush1.xpose.msra.mxu0 0.0
    %1101 = vmatprep.subr.mxu0 0.0
    %1102 = vmatpush1.xpose.msra.mxu0 0.0
    %1103 = vmatprep.subr.mxu0 0.0
    %1104 = vmatpush1.xpose.msra.mxu0 0.0
    %1105 = vmatprep.subr.mxu0 0.0
    %1106 = vmatpush1.xpose.msra.mxu0 0.0
    %1107 = vmatprep.subr.mxu0 0.0
    %1108 = vmatpush1.xpose.msra.mxu0 0.0
    %1109 = vmatprep.subr.mxu0 0.0
    %1110 = vmatpush1.xpose.msra.mxu0 0.0
    %1111 = vmatprep.subr.mxu0 0.0
    %1112 = vmatpush1.xpose.msra.mxu0 0.0
    %1113 = vmatprep.subr.mxu0 0.0
    %1114 = vmatpush1.xpose.msra.mxu0 0.0
    %1115 = vmatprep.subr.mxu0 0.0
    %1116 = vmatpush1.xpose.msra.mxu0 0.0
    %1117 = vmatprep.subr.mxu0 0.0
    %1118 = vmatpush1.xpose.msra.mxu0 0.0
    %1119 = vmatprep.subr.mxu0 0.0
    %1120 = vmatpush1.xpose.msra.mxu0 0.0
    %1121 = vmatprep.subr.mxu0 0.0
    %1122 = vmatpush1.xpose.msra.mxu0 0.0
    %1123 = vmatprep.subr.mxu0 0.0
    %1124 = vmatpush1.xpose.msra.mxu0 0.0
    %1125 = vmatprep.subr.mxu0 0.0
    %1126 = vmatpush1.xpose.msra.mxu0 0.0
    %1127 = vmatprep.subr.mxu0 0.0
    %1128 = vmatpush1.xpose.msra.mxu0 0.0
    %1129 = vmatprep.subr.mxu0 0.0
    %1130 = vmatpush1.xpose.msra.mxu0 0.0
    %1131 = vmatprep.subr.mxu0 0.0
    %1132 = vmatpush1.xpose.msra.mxu0 0.0
    %1133 = vmatprep.subr.mxu0 0.0
    %1134 = vmatpush1.xpose.msra.mxu0 0.0
    %1135 = vmatprep.subr.mxu0 0.0
    %1136 = vmatpush1.xpose.msra.mxu0 0.0
    %1137 = vmatprep.subr.mxu0 0.0
    %1138 = vmatpush1.xpose.msra.mxu0 0.0
    %1139 = vmatprep.subr.mxu0 0.0
    %1140 = vmatpush1.xpose.msra.mxu0 0.0
    %1141 = vmatprep.subr.mxu0 0.0
    %1142 = vmatpush1.xpose.msra.mxu0 0.0
    %1143 = vmatprep.subr.mxu0 0.0
    %1144 = vmatpush1.xpose.msra.mxu0 0.0
    %1145 = vmatprep.subr.mxu0 0.0
    %1146 = vmatpush1.xpose.msra.mxu0 0.0
    %1147 = vmatprep.subr.mxu0 0.0
    %1148 = vmatpush1.xpose.msra.mxu0 0.0
    %1149 = vmatprep.subr.mxu0 0.0
    %1150 = vmatpush1.xpose.msra.mxu0 0.0
    %1151 = vmatprep.mubr.f32.mxu0 0.0
    %v1152 = vand.u32 %v931, 4294901760
    %v1153 = vsub.f32 %v931, %v1152
    %1154 = vmatmul.mubr.f32.gmra.mrb[0].mxu0 %v1153
    %v1155 = vpop.f32.mrb[0].mxu0
    %v1156 = vadd.f32 %v1082, %v1155
    %v1157 = vpop.f32.mrb[0].mxu0
    %1158 = vdwg.mxu0
    %1159 = vmatprep.subr.mxu0 0.0
    %v1160 = vand.u32 %v34, 4294901760
    %1161 = vmatpush1.xpose.msra.mxu0 %v1160
    %1162 = vmatprep.subr.mxu0 0.0
    %1163 = vmatpush1.xpose.msra.mxu0 0.0
    %1164 = vmatprep.subr.mxu0 0.0
    %1165 = vmatpush1.xpose.msra.mxu0 0.0
    %1166 = vmatprep.subr.mxu0 0.0
    %1167 = vmatpush1.xpose.msra.mxu0 0.0
    %1168 = vmatprep.subr.mxu0 0.0
    %1169 = vmatpush1.xpose.msra.mxu0 0.0
    %1170 = vmatprep.subr.mxu0 0.0
    %1171 = vmatpush1.xpose.msra.mxu0 0.0
    %1172 = vmatprep.subr.mxu0 0.0
    %1173 = vmatpush1.xpose.msra.mxu0 0.0
    %1174 = vmatprep.subr.mxu0 0.0
    %1175 = vmatpush1.xpose.msra.mxu0 0.0
    %1176 = vmatprep.subr.mxu0 0.0
    %1177 = vmatpush1.xpose.msra.mxu0 0.0
    %1178 = vmatprep.subr.mxu0 0.0
    %1179 = vmatpush1.xpose.msra.mxu0 0.0
    %1180 = vmatprep.subr.mxu0 0.0
    %1181 = vmatpush1.xpose.msra.mxu0 0.0
    %1182 = vmatprep.subr.mxu0 0.0
    %1183 = vmatpush1.xpose.msra.mxu0 0.0
    %1184 = vmatprep.subr.mxu0 0.0
    %1185 = vmatpush1.xpose.msra.mxu0 0.0
    %1186 = vmatprep.subr.mxu0 0.0
    %1187 = vmatpush1.xpose.msra.mxu0 0.0
    %1188 = vmatprep.subr.mxu0 0.0
    %1189 = vmatpush1.xpose.msra.mxu0 0.0
    %1190 = vmatprep.subr.mxu0 0.0
    %1191 = vmatpush1.xpose.msra.mxu0 0.0
    %1192 = vmatprep.subr.mxu0 0.0
    %1193 = vmatpush1.xpose.msra.mxu0 0.0
    %1194 = vmatprep.subr.mxu0 0.0
    %1195 = vmatpush1.xpose.msra.mxu0 0.0
    %1196 = vmatprep.subr.mxu0 0.0
    %1197 = vmatpush1.xpose.msra.mxu0 0.0
    %1198 = vmatprep.subr.mxu0 0.0
    %1199 = vmatpush1.xpose.msra.mxu0 0.0
    %1200 = vmatprep.subr.mxu0 0.0
    %1201 = vmatpush1.xpose.msra.mxu0 0.0
    %1202 = vmatprep.subr.mxu0 0.0
    %1203 = vmatpush1.xpose.msra.mxu0 0.0
    %1204 = vmatprep.subr.mxu0 0.0
    %1205 = vmatpush1.xpose.msra.mxu0 0.0
    %1206 = vmatprep.subr.mxu0 0.0
    %1207 = vmatpush1.xpose.msra.mxu0 0.0
    %1208 = vmatprep.subr.mxu0 0.0
    %1209 = vmatpush1.xpose.msra.mxu0 0.0
    %1210 = vmatprep.subr.mxu0 0.0
    %1211 = vmatpush1.xpose.msra.mxu0 0.0
    %1212 = vmatprep.subr.mxu0 0.0
    %1213 = vmatpush1.xpose.msra.mxu0 0.0
    %1214 = vmatprep.subr.mxu0 0.0
    %1215 = vmatpush1.xpose.msra.mxu0 0.0
    %1216 = vmatprep.subr.mxu0 0.0
    %1217 = vmatpush1.xpose.msra.mxu0 0.0
    %1218 = vmatprep.subr.mxu0 0.0
    %1219 = vmatpush1.xpose.msra.mxu0 0.0
    %1220 = vmatprep.subr.mxu0 0.0
    %1221 = vmatpush1.xpose.msra.mxu0 0.0
    %1222 = vmatprep.subr.mxu0 0.0
    %1223 = vmatpush1.xpose.msra.mxu0 0.0
    %1224 = vmatprep.mubr.f32.mxu0 0.0
    %v1225 = vand.u32 %v931, 4294901760
    %v1226 = vsub.f32 %v931, %v1225
    %v1227 = vand.u32 %v1226, 4294901760
    %1228 = vmatmul.mubr.f32.gmra.mrb[0].mxu0 %v1227
    %v1229 = vpop.f32.mrb[0].mxu0
    %v1230 = vadd.f32 %v1156, %v1229
    %v1231 = vpop.f32.mrb[0].mxu0
    %1232 = vdwg.mxu0
    %1233 = vmatprep.subr.mxu0 0.0
    %v1234 = vand.u32 %v34, 4294901760
    %v1235 = vsub.f32 %v34, %v1234
    %v1236 = vand.u32 %v1235, 4294901760
    %1237 = vmatpush1.xpose.msra.mxu0 %v1236
    %1238 = vmatprep.subr.mxu0 0.0
    %1239 = vmatpush1.xpose.msra.mxu0 0.0
    %1240 = vmatprep.subr.mxu0 0.0
    %1241 = vmatpush1.xpose.msra.mxu0 0.0
    %1242 = vmatprep.subr.mxu0 0.0
    %1243 = vmatpush1.xpose.msra.mxu0 0.0
    %1244 = vmatprep.subr.mxu0 0.0
    %1245 = vmatpush1.xpose.msra.mxu0 0.0
    %1246 = vmatprep.subr.mxu0 0.0
    %1247 = vmatpush1.xpose.msra.mxu0 0.0
    %1248 = vmatprep.subr.mxu0 0.0
    %1249 = vmatpush1.xpose.msra.mxu0 0.0
    %1250 = vmatprep.subr.mxu0 0.0
    %1251 = vmatpush1.xpose.msra.mxu0 0.0
    %1252 = vmatprep.subr.mxu0 0.0
    %1253 = vmatpush1.xpose.msra.mxu0 0.0
    %1254 = vmatprep.subr.mxu0 0.0
    %1255 = vmatpush1.xpose.msra.mxu0 0.0
    %1256 = vmatprep.subr.mxu0 0.0
    %1257 = vmatpush1.xpose.msra.mxu0 0.0
    %1258 = vmatprep.subr.mxu0 0.0
    %1259 = vmatpush1.xpose.msra.mxu0 0.0
    %1260 = vmatprep.subr.mxu0 0.0
    %1261 = vmatpush1.xpose.msra.mxu0 0.0
    %1262 = vmatprep.subr.mxu0 0.0
    %1263 = vmatpush1.xpose.msra.mxu0 0.0
    %1264 = vmatprep.subr.mxu0 0.0
    %1265 = vmatpush1.xpose.msra.mxu0 0.0
    %1266 = vmatprep.subr.mxu0 0.0
    %1267 = vmatpush1.xpose.msra.mxu0 0.0
    %1268 = vmatprep.subr.mxu0 0.0
    %1269 = vmatpush1.xpose.msra.mxu0 0.0
    %1270 = vmatprep.subr.mxu0 0.0
    %1271 = vmatpush1.xpose.msra.mxu0 0.0
    %1272 = vmatprep.subr.mxu0 0.0
    %1273 = vmatpush1.xpose.msra.mxu0 0.0
    %1274 = vmatprep.subr.mxu0 0.0
    %1275 = vmatpush1.xpose.msra.mxu0 0.0
    %1276 = vmatprep.subr.mxu0 0.0
    %1277 = vmatpush1.xpose.msra.mxu0 0.0
    %1278 = vmatprep.subr.mxu0 0.0
    %1279 = vmatpush1.xpose.msra.mxu0 0.0
    %1280 = vmatprep.subr.mxu0 0.0
    %1281 = vmatpush1.xpose.msra.mxu0 0.0
    %1282 = vmatprep.subr.mxu0 0.0
    %1283 = vmatpush1.xpose.msra.mxu0 0.0
    %1284 = vmatprep.subr.mxu0 0.0
    %1285 = vmatpush1.xpose.msra.mxu0 0.0
    %1286 = vmatprep.subr.mxu0 0.0
    %1287 = vmatpush1.xpose.msra.mxu0 0.0
    %1288 = vmatprep.subr.mxu0 0.0
    %1289 = vmatpush1.xpose.msra.mxu0 0.0
    %1290 = vmatprep.subr.mxu0 0.0
    %1291 = vmatpush1.xpose.msra.mxu0 0.0
    %1292 = vmatprep.subr.mxu0 0.0
    %1293 = vmatpush1.xpose.msra.mxu0 0.0
    %1294 = vmatprep.subr.mxu0 0.0
    %1295 = vmatpush1.xpose.msra.mxu0 0.0
    %1296 = vmatprep.subr.mxu0 0.0
    %1297 = vmatpush1.xpose.msra.mxu0 0.0
    %1298 = vmatprep.subr.mxu0 0.0
    %1299 = vmatpush1.xpose.msra.mxu0 0.0
    %1300 = vmatprep.mubr.f32.mxu0 0.0
    %v1301 = vand.u32 %v931, 4294901760
    %1302 = vmatmul.mubr.f32.gmra.mrb[0].mxu0 %v1301
    %v1303 = vpop.f32.mrb[0].mxu0
    %v1304 = vadd.f32 %v1230, %v1303
    %v1305 = vpop.f32.mrb[0].mxu0
    %1306 = vdwg.mxu0
    %1307 = vmatprep.subr.mxu0 0.0
    %v1308 = vand.u32 %v34, 4294901760
    %1309 = vmatpush1.xpose.msra.mxu0 %v1308
    %1310 = vmatprep.subr.mxu0 0.0
    %1311 = vmatpush1.xpose.msra.mxu0 0.0
    %1312 = vmatprep.subr.mxu0 0.0
    %1313 = vmatpush1.xpose.msra.mxu0 0.0
    %1314 = vmatprep.subr.mxu0 0.0
    %1315 = vmatpush1.xpose.msra.mxu0 0.0
    %1316 = vmatprep.subr.mxu0 0.0
    %1317 = vmatpush1.xpose.msra.mxu0 0.0
    %1318 = vmatprep.subr.mxu0 0.0
    %1319 = vmatpush1.xpose.msra.mxu0 0.0
    %1320 = vmatprep.subr.mxu0 0.0
    %1321 = vmatpush1.xpose.msra.mxu0 0.0
    %1322 = vmatprep.subr.mxu0 0.0
    %1323 = vmatpush1.xpose.msra.mxu0 0.0
    %1324 = vmatprep.subr.mxu0 0.0
    %1325 = vmatpush1.xpose.msra.mxu0 0.0
    %1326 = vmatprep.subr.mxu0 0.0
    %1327 = vmatpush1.xpose.msra.mxu0 0.0
    %1328 = vmatprep.subr.mxu0 0.0
    %1329 = vmatpush1.xpose.msra.mxu0 0.0
    %1330 = vmatprep.subr.mxu0 0.0
    %1331 = vmatpush1.xpose.msra.mxu0 0.0
    %1332 = vmatprep.subr.mxu0 0.0
    %1333 = vmatpush1.xpose.msra.mxu0 0.0
    %1334 = vmatprep.subr.mxu0 0.0
    %1335 = vmatpush1.xpose.msra.mxu0 0.0
    %1336 = vmatprep.subr.mxu0 0.0
    %1337 = vmatpush1.xpose.msra.mxu0 0.0
    %1338 = vmatprep.subr.mxu0 0.0
    %1339 = vmatpush1.xpose.msra.mxu0 0.0
    %1340 = vmatprep.subr.mxu0 0.0
    %1341 = vmatpush1.xpose.msra.mxu0 0.0
    %1342 = vmatprep.subr.mxu0 0.0
    %1343 = vmatpush1.xpose.msra.mxu0 0.0
    %1344 = vmatprep.subr.mxu0 0.0
    %1345 = vmatpush1.xpose.msra.mxu0 0.0
    %1346 = vmatprep.subr.mxu0 0.0
    %1347 = vmatpush1.xpose.msra.mxu0 0.0
    %1348 = vmatprep.subr.mxu0 0.0
    %1349 = vmatpush1.xpose.msra.mxu0 0.0
    %1350 = vmatprep.subr.mxu0 0.0
    %1351 = vmatpush1.xpose.msra.mxu0 0.0
    %1352 = vmatprep.subr.mxu0 0.0
    %1353 = vmatpush1.xpose.msra.mxu0 0.0
    %1354 = vmatprep.subr.mxu0 0.0
    %1355 = vmatpush1.xpose.msra.mxu0 0.0
    %1356 = vmatprep.subr.mxu0 0.0
    %1357 = vmatpush1.xpose.msra.mxu0 0.0
    %1358 = vmatprep.subr.mxu0 0.0
    %1359 = vmatpush1.xpose.msra.mxu0 0.0
    %1360 = vmatprep.subr.mxu0 0.0
    %1361 = vmatpush1.xpose.msra.mxu0 0.0
    %1362 = vmatprep.subr.mxu0 0.0
    %1363 = vmatpush1.xpose.msra.mxu0 0.0
    %1364 = vmatprep.subr.mxu0 0.0
    %1365 = vmatpush1.xpose.msra.mxu0 0.0
    %1366 = vmatprep.subr.mxu0 0.0
    %1367 = vmatpush1.xpose.msra.mxu0 0.0
    %1368 = vmatprep.subr.mxu0 0.0
    %1369 = vmatpush1.xpose.msra.mxu0 0.0
    %1370 = vmatprep.subr.mxu0 0.0
    %1371 = vmatpush1.xpose.msra.mxu0 0.0
    %1372 = vmatprep.mubr.f32.mxu0 0.0
    %v1373 = vand.u32 %v931, 4294901760
    %1374 = vmatmul.mubr.f32.gmra.mrb[0].mxu0 %v1373
    %v1375 = vpop.f32.mrb[0].mxu0
    %v1376 = vadd.f32 %v1304, %v1375
    %v1377 = vpop.f32.mrb[0].mxu0
    %1378 = vdwg.mxu0
    %1379 = vmatprep.subr.mxu0 0.0
    %v1380 = vand.u32 %v35, 4294901760
    %1381 = vmatpush1.xpose.msra.mxu0 %v1380
    %1382 = vmatprep.subr.mxu0 0.0
    %1383 = vmatpush1.xpose.msra.mxu0 0.0
    %1384 = vmatprep.subr.mxu0 0.0
    %1385 = vmatpush1.xpose.msra.mxu0 0.0
    %1386 = vmatprep.subr.mxu0 0.0
    %1387 = vmatpush1.xpose.msra.mxu0 0.0
    %1388 = vmatprep.subr.mxu0 0.0
    %1389 = vmatpush1.xpose.msra.mxu0 0.0
    %1390 = vmatprep.subr.mxu0 0.0
    %1391 = vmatpush1.xpose.msra.mxu0 0.0
    %1392 = vmatprep.subr.mxu0 0.0
    %1393 = vmatpush1.xpose.msra.mxu0 0.0
    %1394 = vmatprep.subr.mxu0 0.0
    %1395 = vmatpush1.xpose.msra.mxu0 0.0
    %1396 = vmatprep.subr.mxu0 0.0
    %1397 = vmatpush1.xpose.msra.mxu0 0.0
    %1398 = vmatprep.subr.mxu0 0.0
    %1399 = vmatpush1.xpose.msra.mxu0 0.0
    %1400 = vmatprep.subr.mxu0 0.0
    %1401 = vmatpush1.xpose.msra.mxu0 0.0
    %1402 = vmatprep.subr.mxu0 0.0
    %1403 = vmatpush1.xpose.msra.mxu0 0.0
    %1404 = vmatprep.subr.mxu0 0.0
    %1405 = vmatpush1.xpose.msra.mxu0 0.0
    %1406 = vmatprep.subr.mxu0 0.0
    %1407 = vmatpush1.xpose.msra.mxu0 0.0
    %1408 = vmatprep.subr.mxu0 0.0
    %1409 = vmatpush1.xpose.msra.mxu0 0.0
    %1410 = vmatprep.subr.mxu0 0.0
    %1411 = vmatpush1.xpose.msra.mxu0 0.0
    %1412 = vmatprep.subr.mxu0 0.0
    %1413 = vmatpush1.xpose.msra.mxu0 0.0
    %1414 = vmatprep.subr.mxu0 0.0
    %1415 = vmatpush1.xpose.msra.mxu0 0.0
    %1416 = vmatprep.subr.mxu0 0.0
    %1417 = vmatpush1.xpose.msra.mxu0 0.0
    %1418 = vmatprep.subr.mxu0 0.0
    %1419 = vmatpush1.xpose.msra.mxu0 0.0
    %1420 = vmatprep.subr.mxu0 0.0
    %1421 = vmatpush1.xpose.msra.mxu0 0.0
    %1422 = vmatprep.subr.mxu0 0.0
    %1423 = vmatpush1.xpose.msra.mxu0 0.0
    %1424 = vmatprep.subr.mxu0 0.0
    %1425 = vmatpush1.xpose.msra.mxu0 0.0
    %1426 = vmatprep.subr.mxu0 0.0
    %1427 = vmatpush1.xpose.msra.mxu0 0.0
    %1428 = vmatprep.subr.mxu0 0.0
    %1429 = vmatpush1.xpose.msra.mxu0 0.0
    %1430 = vmatprep.subr.mxu0 0.0
    %1431 = vmatpush1.xpose.msra.mxu0 0.0
    %1432 = vmatprep.subr.mxu0 0.0
    %1433 = vmatpush1.xpose.msra.mxu0 0.0
    %1434 = vmatprep.subr.mxu0 0.0
    %1435 = vmatpush1.xpose.msra.mxu0 0.0
    %1436 = vmatprep.subr.mxu0 0.0
    %1437 = vmatpush1.xpose.msra.mxu0 0.0
    %1438 = vmatprep.subr.mxu0 0.0
    %1439 = vmatpush1.xpose.msra.mxu0 0.0
    %1440 = vmatprep.subr.mxu0 0.0
    %1441 = vmatpush1.xpose.msra.mxu0 0.0
    %1442 = vmatprep.subr.mxu0 0.0
    %1443 = vmatpush1.xpose.msra.mxu0 0.0
    %1444 = vmatprep.mubr.f32.mxu0 0.0
    %v1445 = vand.u32 %v932, 4294901760
    %v1446 = vsub.f32 %v932, %v1445
    %v1447 = vand.u32 %v1446, 4294901760
    %v1448 = vsub.f32 %v1446, %v1447
    %v1449 = vand.u32 %v1448, 4294901760
    %1450 = vmatmul.mubr.f32.gmra.mrb[0].mxu0 %v1449
    %v1451 = vpop.f32.mrb[0].mxu0
    %v1452 = vadd.f32 %v38, %v1451
    %v1453 = vpop.f32.mrb[0].mxu0
    %1454 = vdwg.mxu0
    %1455 = vmatprep.subr.mxu0 0.0
    %v1456 = vand.u32 %v35, 4294901760
    %v1457 = vsub.f32 %v35, %v1456
    %v1458 = vand.u32 %v1457, 4294901760
    %v1459 = vsub.f32 %v1457, %v1458
    %v1460 = vand.u32 %v1459, 4294901760
    %1461 = vmatpush1.xpose.msra.mxu0 %v1460
    %1462 = vmatprep.subr.mxu0 0.0
    %1463 = vmatpush1.xpose.msra.mxu0 0.0
    %1464 = vmatprep.subr.mxu0 0.0
    %1465 = vmatpush1.xpose.msra.mxu0 0.0
    %1466 = vmatprep.subr.mxu0 0.0
    %1467 = vmatpush1.xpose.msra.mxu0 0.0
    %1468 = vmatprep.subr.mxu0 0.0
    %1469 = vmatpush1.xpose.msra.mxu0 0.0
    %1470 = vmatprep.subr.mxu0 0.0
    %1471 = vmatpush1.xpose.msra.mxu0 0.0
    %1472 = vmatprep.subr.mxu0 0.0
    %1473 = vmatpush1.xpose.msra.mxu0 0.0
    %1474 = vmatprep.subr.mxu0 0.0
    %1475 = vmatpush1.xpose.msra.mxu0 0.0
    %1476 = vmatprep.subr.mxu0 0.0
    %1477 = vmatpush1.xpose.msra.mxu0 0.0
    %1478 = vmatprep.subr.mxu0 0.0
    %1479 = vmatpush1.xpose.msra.mxu0 0.0
    %1480 = vmatprep.subr.mxu0 0.0
    %1481 = vmatpush1.xpose.msra.mxu0 0.0
    %1482 = vmatprep.subr.mxu0 0.0
    %1483 = vmatpush1.xpose.msra.mxu0 0.0
    %1484 = vmatprep.subr.mxu0 0.0
    %1485 = vmatpush1.xpose.msra.mxu0 0.0
    %1486 = vmatprep.subr.mxu0 0.0
    %1487 = vmatpush1.xpose.msra.mxu0 0.0
    %1488 = vmatprep.subr.mxu0 0.0
    %1489 = vmatpush1.xpose.msra.mxu0 0.0
    %1490 = vmatprep.subr.mxu0 0.0
    %1491 = vmatpush1.xpose.msra.mxu0 0.0
    %1492 = vmatprep.subr.mxu0 0.0
    %1493 = vmatpush1.xpose.msra.mxu0 0.0
    %1494 = vmatprep.subr.mxu0 0.0
    %1495 = vmatpush1.xpose.msra.mxu0 0.0
    %1496 = vmatprep.subr.mxu0 0.0
    %1497 = vmatpush1.xpose.msra.mxu0 0.0
    %1498 = vmatprep.subr.mxu0 0.0
    %1499 = vmatpush1.xpose.msra.mxu0 0.0
    %1500 = vmatprep.subr.mxu0 0.0
    %1501 = vmatpush1.xpose.msra.mxu0 0.0
    %1502 = vmatprep.subr.mxu0 0.0
    %1503 = vmatpush1.xpose.msra.mxu0 0.0
    %1504 = vmatprep.subr.mxu0 0.0
    %1505 = vmatpush1.xpose.msra.mxu0 0.0
    %1506 = vmatprep.subr.mxu0 0.0
    %1507 = vmatpush1.xpose.msra.mxu0 0.0
    %1508 = vmatprep.subr.mxu0 0.0
    %1509 = vmatpush1.xpose.msra.mxu0 0.0
    %1510 = vmatprep.subr.mxu0 0.0
    %1511 = vmatpush1.xpose.msra.mxu0 0.0
    %1512 = vmatprep.subr.mxu0 0.0
    %1513 = vmatpush1.xpose.msra.mxu0 0.0
    %1514 = vmatprep.subr.mxu0 0.0
    %1515 = vmatpush1.xpose.msra.mxu0 0.0
    %1516 = vmatprep.subr.mxu0 0.0
    %1517 = vmatpush1.xpose.msra.mxu0 0.0
    %1518 = vmatprep.subr.mxu0 0.0
    %1519 = vmatpush1.xpose.msra.mxu0 0.0
    %1520 = vmatprep.subr.mxu0 0.0
    %1521 = vmatpush1.xpose.msra.mxu0 0.0
    %1522 = vmatprep.subr.mxu0 0.0
    %1523 = vmatpush1.xpose.msra.mxu0 0.0
    %1524 = vmatprep.mubr.f32.mxu0 0.0
    %v1525 = vand.u32 %v932, 4294901760
    %1526 = vmatmul.mubr.f32.gmra.mrb[0].mxu0 %v1525
    %v1527 = vpop.f32.mrb[0].mxu0
    %v1528 = vadd.f32 %v1452, %v1527
    %v1529 = vpop.f32.mrb[0].mxu0
    %1530 = vdwg.mxu0
    %1531 = vmatprep.subr.mxu0 0.0
    %v1532 = vand.u32 %v35, 4294901760
    %v1533 = vsub.f32 %v35, %v1532
    %1534 = vmatpush1.xpose.msra.mxu0 %v1533
    %1535 = vmatprep.subr.mxu0 0.0
    %1536 = vmatpush1.xpose.msra.mxu0 0.0
    %1537 = vmatprep.subr.mxu0 0.0
    %1538 = vmatpush1.xpose.msra.mxu0 0.0
    %1539 = vmatprep.subr.mxu0 0.0
    %1540 = vmatpush1.xpose.msra.mxu0 0.0
    %1541 = vmatprep.subr.mxu0 0.0
    %1542 = vmatpush1.xpose.msra.mxu0 0.0
    %1543 = vmatprep.subr.mxu0 0.0
    %1544 = vmatpush1.xpose.msra.mxu0 0.0
    %1545 = vmatprep.subr.mxu0 0.0
    %1546 = vmatpush1.xpose.msra.mxu0 0.0
    %1547 = vmatprep.subr.mxu0 0.0
    %1548 = vmatpush1.xpose.msra.mxu0 0.0
    %1549 = vmatprep.subr.mxu0 0.0
    %1550 = vmatpush1.xpose.msra.mxu0 0.0
    %1551 = vmatprep.subr.mxu0 0.0
    %1552 = vmatpush1.xpose.msra.mxu0 0.0
    %1553 = vmatprep.subr.mxu0 0.0
    %1554 = vmatpush1.xpose.msra.mxu0 0.0
    %1555 = vmatprep.subr.mxu0 0.0
    %1556 = vmatpush1.xpose.msra.mxu0 0.0
    %1557 = vmatprep.subr.mxu0 0.0
    %1558 = vmatpush1.xpose.msra.mxu0 0.0
    %1559 = vmatprep.subr.mxu0 0.0
    %1560 = vmatpush1.xpose.msra.mxu0 0.0
    %1561 = vmatprep.subr.mxu0 0.0
    %1562 = vmatpush1.xpose.msra.mxu0 0.0
    %1563 = vmatprep.subr.mxu0 0.0
    %1564 = vmatpush1.xpose.msra.mxu0 0.0
    %1565 = vmatprep.subr.mxu0 0.0
    %1566 = vmatpush1.xpose.msra.mxu0 0.0
    %1567 = vmatprep.subr.mxu0 0.0
    %1568 = vmatpush1.xpose.msra.mxu0 0.0
    %1569 = vmatprep.subr.mxu0 0.0
    %1570 = vmatpush1.xpose.msra.mxu0 0.0
    %1571 = vmatprep.subr.mxu0 0.0
    %1572 = vmatpush1.xpose.msra.mxu0 0.0
    %1573 = vmatprep.subr.mxu0 0.0
    %1574 = vmatpush1.xpose.msra.mxu0 0.0
    %1575 = vmatprep.subr.mxu0 0.0
    %1576 = vmatpush1.xpose.msra.mxu0 0.0
    %1577 = vmatprep.subr.mxu0 0.0
    %1578 = vmatpush1.xpose.msra.mxu0 0.0
    %1579 = vmatprep.subr.mxu0 0.0
    %1580 = vmatpush1.xpose.msra.mxu0 0.0
    %1581 = vmatprep.subr.mxu0 0.0
    %1582 = vmatpush1.xpose.msra.mxu0 0.0
    %1583 = vmatprep.subr.mxu0 0.0
    %1584 = vmatpush1.xpose.msra.mxu0 0.0
    %1585 = vmatprep.subr.mxu0 0.0
    %1586 = vmatpush1.xpose.msra.mxu0 0.0
    %1587 = vmatprep.subr.mxu0 0.0
    %1588 = vmatpush1.xpose.msra.mxu0 0.0
    %1589 = vmatprep.subr.mxu0 0.0
    %1590 = vmatpush1.xpose.msra.mxu0 0.0
    %1591 = vmatprep.subr.mxu0 0.0
    %1592 = vmatpush1.xpose.msra.mxu0 0.0
    %1593 = vmatprep.subr.mxu0 0.0
    %1594 = vmatpush1.xpose.msra.mxu0 0.0
    %1595 = vmatprep.subr.mxu0 0.0
    %1596 = vmatpush1.xpose.msra.mxu0 0.0
    %1597 = vmatprep.mubr.f32.mxu0 0.0
    %v1598 = vand.u32 %v932, 4294901760
    %v1599 = vsub.f32 %v932, %v1598
    %1600 = vmatmul.mubr.f32.gmra.mrb[0].mxu0 %v1599
    %v1601 = vpop.f32.mrb[0].mxu0
    %v1602 = vadd.f32 %v1528, %v1601
    %v1603 = vpop.f32.mrb[0].mxu0
    %1604 = vdwg.mxu0
    %1605 = vmatprep.subr.mxu0 0.0
    %v1606 = vand.u32 %v35, 4294901760
    %1607 = vmatpush1.xpose.msra.mxu0 %v1606
    %1608 = vmatprep.subr.mxu0 0.0
    %1609 = vmatpush1.xpose.msra.mxu0 0.0
    %1610 = vmatprep.subr.mxu0 0.0
    %1611 = vmatpush1.xpose.msra.mxu0 0.0
    %1612 = vmatprep.subr.mxu0 0.0
    %1613 = vmatpush1.xpose.msra.mxu0 0.0
    %1614 = vmatprep.subr.mxu0 0.0
    %1615 = vmatpush1.xpose.msra.mxu0 0.0
    %1616 = vmatprep.subr.mxu0 0.0
    %1617 = vmatpush1.xpose.msra.mxu0 0.0
    %1618 = vmatprep.subr.mxu0 0.0
    %1619 = vmatpush1.xpose.msra.mxu0 0.0
    %1620 = vmatprep.subr.mxu0 0.0
    %1621 = vmatpush1.xpose.msra.mxu0 0.0
    %1622 = vmatprep.subr.mxu0 0.0
    %1623 = vmatpush1.xpose.msra.mxu0 0.0
    %1624 = vmatprep.subr.mxu0 0.0
    %1625 = vmatpush1.xpose.msra.mxu0 0.0
    %1626 = vmatprep.subr.mxu0 0.0
    %1627 = vmatpush1.xpose.msra.mxu0 0.0
    %1628 = vmatprep.subr.mxu0 0.0
    %1629 = vmatpush1.xpose.msra.mxu0 0.0
    %1630 = vmatprep.subr.mxu0 0.0
    %1631 = vmatpush1.xpose.msra.mxu0 0.0
    %1632 = vmatprep.subr.mxu0 0.0
    %1633 = vmatpush1.xpose.msra.mxu0 0.0
    %1634 = vmatprep.subr.mxu0 0.0
    %1635 = vmatpush1.xpose.msra.mxu0 0.0
    %1636 = vmatprep.subr.mxu0 0.0
    %1637 = vmatpush1.xpose.msra.mxu0 0.0
    %1638 = vmatprep.subr.mxu0 0.0
    %1639 = vmatpush1.xpose.msra.mxu0 0.0
    %1640 = vmatprep.subr.mxu0 0.0
    %1641 = vmatpush1.xpose.msra.mxu0 0.0
    %1642 = vmatprep.subr.mxu0 0.0
    %1643 = vmatpush1.xpose.msra.mxu0 0.0
    %1644 = vmatprep.subr.mxu0 0.0
    %1645 = vmatpush1.xpose.msra.mxu0 0.0
    %1646 = vmatprep.subr.mxu0 0.0
    %1647 = vmatpush1.xpose.msra.mxu0 0.0
    %1648 = vmatprep.subr.mxu0 0.0
    %1649 = vmatpush1.xpose.msra.mxu0 0.0
    %1650 = vmatprep.subr.mxu0 0.0
    %1651 = vmatpush1.xpose.msra.mxu0 0.0
    %1652 = vmatprep.subr.mxu0 0.0
    %1653 = vmatpush1.xpose.msra.mxu0 0.0
    %1654 = vmatprep.subr.mxu0 0.0
    %1655 = vmatpush1.xpose.msra.mxu0 0.0
    %1656 = vmatprep.subr.mxu0 0.0
    %1657 = vmatpush1.xpose.msra.mxu0 0.0
    %1658 = vmatprep.subr.mxu0 0.0
    %1659 = vmatpush1.xpose.msra.mxu0 0.0
    %1660 = vmatprep.subr.mxu0 0.0
    %1661 = vmatpush1.xpose.msra.mxu0 0.0
    %1662 = vmatprep.subr.mxu0 0.0
    %1663 = vmatpush1.xpose.msra.mxu0 0.0
    %1664 = vmatprep.subr.mxu0 0.0
    %1665 = vmatpush1.xpose.msra.mxu0 0.0
    %1666 = vmatprep.subr.mxu0 0.0
    %1667 = vmatpush1.xpose.msra.mxu0 0.0
    %1668 = vmatprep.subr.mxu0 0.0
    %1669 = vmatpush1.xpose.msra.mxu0 0.0
    %1670 = vmatprep.mubr.f32.mxu0 0.0
    %v1671 = vand.u32 %v932, 4294901760
    %v1672 = vsub.f32 %v932, %v1671
    %v1673 = vand.u32 %v1672, 4294901760
    %1674 = vmatmul.mubr.f32.gmra.mrb[0].mxu0 %v1673
    %v1675 = vpop.f32.mrb[0].mxu0
    %v1676 = vadd.f32 %v1602, %v1675
    %v1677 = vpop.f32.mrb[0].mxu0
    %1678 = vdwg.mxu0
    %1679 = vmatprep.subr.mxu0 0.0
    %v1680 = vand.u32 %v35, 4294901760
    %v1681 = vsub.f32 %v35, %v1680
    %v1682 = vand.u32 %v1681, 4294901760
    %1683 = vmatpush1.xpose.msra.mxu0 %v1682
    %1684 = vmatprep.subr.mxu0 0.0
    %1685 = vmatpush1.xpose.msra.mxu0 0.0
    %1686 = vmatprep.subr.mxu0 0.0
    %1687 = vmatpush1.xpose.msra.mxu0 0.0
    %1688 = vmatprep.subr.mxu0 0.0
    %1689 = vmatpush1.xpose.msra.mxu0 0.0
    %1690 = vmatprep.subr.mxu0 0.0
    %1691 = vmatpush1.xpose.msra.mxu0 0.0
    %1692 = vmatprep.subr.mxu0 0.0
    %1693 = vmatpush1.xpose.msra.mxu0 0.0
    %1694 = vmatprep.subr.mxu0 0.0
    %1695 = vmatpush1.xpose.msra.mxu0 0.0
    %1696 = vmatprep.subr.mxu0 0.0
    %1697 = vmatpush1.xpose.msra.mxu0 0.0
    %1698 = vmatprep.subr.mxu0 0.0
    %1699 = vmatpush1.xpose.msra.mxu0 0.0
    %1700 = vmatprep.subr.mxu0 0.0
    %1701 = vmatpush1.xpose.msra.mxu0 0.0
    %1702 = vmatprep.subr.mxu0 0.0
    %1703 = vmatpush1.xpose.msra.mxu0 0.0
    %1704 = vmatprep.subr.mxu0 0.0
    %1705 = vmatpush1.xpose.msra.mxu0 0.0
    %1706 = vmatprep.subr.mxu0 0.0
    %1707 = vmatpush1.xpose.msra.mxu0 0.0
    %1708 = vmatprep.subr.mxu0 0.0
    %1709 = vmatpush1.xpose.msra.mxu0 0.0
    %1710 = vmatprep.subr.mxu0 0.0
    %1711 = vmatpush1.xpose.msra.mxu0 0.0
    %1712 = vmatprep.subr.mxu0 0.0
    %1713 = vmatpush1.xpose.msra.mxu0 0.0
    %1714 = vmatprep.subr.mxu0 0.0
    %1715 = vmatpush1.xpose.msra.mxu0 0.0
    %1716 = vmatprep.subr.mxu0 0.0
    %1717 = vmatpush1.xpose.msra.mxu0 0.0
    %1718 = vmatprep.subr.mxu0 0.0
    %1719 = vmatpush1.xpose.msra.mxu0 0.0
    %1720 = vmatprep.subr.mxu0 0.0
    %1721 = vmatpush1.xpose.msra.mxu0 0.0
    %1722 = vmatprep.subr.mxu0 0.0
    %1723 = vmatpush1.xpose.msra.mxu0 0.0
    %1724 = vmatprep.subr.mxu0 0.0
    %1725 = vmatpush1.xpose.msra.mxu0 0.0
    %1726 = vmatprep.subr.mxu0 0.0
    %1727 = vmatpush1.xpose.msra.mxu0 0.0
    %1728 = vmatprep.subr.mxu0 0.0
    %1729 = vmatpush1.xpose.msra.mxu0 0.0
    %1730 = vmatprep.subr.mxu0 0.0
    %1731 = vmatpush1.xpose.msra.mxu0 0.0
    %1732 = vmatprep.subr.mxu0 0.0
    %1733 = vmatpush1.xpose.msra.mxu0 0.0
    %1734 = vmatprep.subr.mxu0 0.0
    %1735 = vmatpush1.xpose.msra.mxu0 0.0
    %1736 = vmatprep.subr.mxu0 0.0
    %1737 = vmatpush1.xpose.msra.mxu0 0.0
    %1738 = vmatprep.subr.mxu0 0.0
    %1739 = vmatpush1.xpose.msra.mxu0 0.0
    %1740 = vmatprep.subr.mxu0 0.0
    %1741 = vmatpush1.xpose.msra.mxu0 0.0
    %1742 = vmatprep.subr.mxu0 0.0
    %1743 = vmatpush1.xpose.msra.mxu0 0.0
    %1744 = vmatprep.subr.mxu0 0.0
    %1745 = vmatpush1.xpose.msra.mxu0 0.0
    %1746 = vmatprep.mubr.f32.mxu0 0.0
    %v1747 = vand.u32 %v932, 4294901760
    %1748 = vmatmul.mubr.f32.gmra.mrb[0].mxu0 %v1747
    %v1749 = vpop.f32.mrb[0].mxu0
    %v1750 = vadd.f32 %v1676, %v1749
    %v1751 = vpop.f32.mrb[0].mxu0
    %1752 = vdwg.mxu0
    %1753 = vmatprep.subr.mxu0 0.0
    %v1754 = vand.u32 %v35, 4294901760
    %1755 = vmatpush1.xpose.msra.mxu0 %v1754
    %1756 = vmatprep.subr.mxu0 0.0
    %1757 = vmatpush1.xpose.msra.mxu0 0.0
    %1758 = vmatprep.subr.mxu0 0.0
    %1759 = vmatpush1.xpose.msra.mxu0 0.0
    %1760 = vmatprep.subr.mxu0 0.0
    %1761 = vmatpush1.xpose.msra.mxu0 0.0
    %1762 = vmatprep.subr.mxu0 0.0
    %1763 = vmatpush1.xpose.msra.mxu0 0.0
    %1764 = vmatprep.subr.mxu0 0.0
    %1765 = vmatpush1.xpose.msra.mxu0 0.0
    %1766 = vmatprep.subr.mxu0 0.0
    %1767 = vmatpush1.xpose.msra.mxu0 0.0
    %1768 = vmatprep.subr.mxu0 0.0
    %1769 = vmatpush1.xpose.msra.mxu0 0.0
    %1770 = vmatprep.subr.mxu0 0.0
    %1771 = vmatpush1.xpose.msra.mxu0 0.0
    %1772 = vmatprep.subr.mxu0 0.0
    %1773 = vmatpush1.xpose.msra.mxu0 0.0
    %1774 = vmatprep.subr.mxu0 0.0
    %1775 = vmatpush1.xpose.msra.mxu0 0.0
    %1776 = vmatprep.subr.mxu0 0.0
    %1777 = vmatpush1.xpose.msra.mxu0 0.0
    %1778 = vmatprep.subr.mxu0 0.0
    %1779 = vmatpush1.xpose.msra.mxu0 0.0
    %1780 = vmatprep.subr.mxu0 0.0
    %1781 = vmatpush1.xpose.msra.mxu0 0.0
    %1782 = vmatprep.subr.mxu0 0.0
    %1783 = vmatpush1.xpose.msra.mxu0 0.0
    %1784 = vmatprep.subr.mxu0 0.0
    %1785 = vmatpush1.xpose.msra.mxu0 0.0
    %1786 = vmatprep.subr.mxu0 0.0
    %1787 = vmatpush1.xpose.msra.mxu0 0.0
    %1788 = vmatprep.subr.mxu0 0.0
    %1789 = vmatpush1.xpose.msra.mxu0 0.0
    %1790 = vmatprep.subr.mxu0 0.0
    %1791 = vmatpush1.xpose.msra.mxu0 0.0
    %1792 = vmatprep.subr.mxu0 0.0
    %1793 = vmatpush1.xpose.msra.mxu0 0.0
    %1794 = vmatprep.subr.mxu0 0.0
    %1795 = vmatpush1.xpose.msra.mxu0 0.0
    %1796 = vmatprep.subr.mxu0 0.0
    %1797 = vmatpush1.xpose.msra.mxu0 0.0
    %1798 = vmatprep.subr.mxu0 0.0
    %1799 = vmatpush1.xpose.msra.mxu0 0.0
    %1800 = vmatprep.subr.mxu0 0.0
    %1801 = vmatpush1.xpose.msra.mxu0 0.0
    %1802 = vmatprep.subr.mxu0 0.0
    %1803 = vmatpush1.xpose.msra.mxu0 0.0
    %1804 = vmatprep.subr.mxu0 0.0
    %1805 = vmatpush1.xpose.msra.mxu0 0.0
    %1806 = vmatprep.subr.mxu0 0.0
    %1807 = vmatpush1.xpose.msra.mxu0 0.0
    %1808 = vmatprep.subr.mxu0 0.0
    %1809 = vmatpush1.xpose.msra.mxu0 0.0
    %1810 = vmatprep.subr.mxu0 0.0
    %1811 = vmatpush1.xpose.msra.mxu0 0.0
    %1812 = vmatprep.subr.mxu0 0.0
    %1813 = vmatpush1.xpose.msra.mxu0 0.0
    %1814 = vmatprep.subr.mxu0 0.0
    %1815 = vmatpush1.xpose.msra.mxu0 0.0
    %1816 = vmatprep.subr.mxu0 0.0
    %1817 = vmatpush1.xpose.msra.mxu0 0.0
    %1818 = vmatprep.mubr.f32.mxu0 0.0
    %v1819 = vand.u32 %v932, 4294901760
    %1820 = vmatmul.mubr.f32.gmra.mrb[0].mxu0 %v1819
    %v1821 = vpop.f32.mrb[0].mxu0
    %v1822 = vadd.f32 %v1750, %v1821
    %v1823 = vpop.f32.mrb[0].mxu0
    %1824 = vdwg.mxu0
    %vm1825 = vcmask 25600
    %1826 = vst.msk [vmem:[#allocation6] sm:$0x3] %vm1825, %v482
    %1827 = vst.msk [vmem:[#allocation6 + $0x4] sm:$0x3] %vm1825, %v928
    %s1828 = scalar_lea.vmem [#allocation6], 2
    %1829 = vst.msk [vmem:[%s1828] sm:$0x3] %vm1825, %v1376
    %1830 = vst.msk [vmem:[%s1828 + $0x4] sm:$0x3] %vm1825, %v1822
    // Predicated region
    $region22: #{tpu_custom_call.1} parent=1 // pred_check
      _
    $region23: #{tpu_custom_call.1} parent=1 // pred_check_branch
      %1832 = sbr.rel (0) target = $region25
    $region24: #{tpu_custom_call.1} parent=1 // pred_region
      %s1834 = ssub.s32 128, 128
      %1835 = vsyncadd [#allocation5], %s1834
      %s1836 = sshll.u32 [#allocation6], 4
      %s1837 = int_to_ptr.vmem [resolvable:$true] %s1836
      %1842 = dma.vmem_to_hbm [thread:$0]  %s1837, 128, %s4, [#allocation5], 32, 32, 2
    $region25: #{tpu_custom_call.1} parent=1 // pred_fallthru
      _
    // Predicated region
    $region26: #{tpu_custom_call.1} parent=1 // pred_check
      _
    $region27: #{tpu_custom_call.1} parent=1 // pred_check_branch
      %1844 = sbr.rel (0) target = $region29
    $region28: #{tpu_custom_call.1} parent=1 // pred_region
      %1845 = dma.done [#allocation5], 128
    $region29: #{tpu_custom_call.1} parent=1 // pred_fallthru
      _
    %1846 = vsyncpa [#allocation4], 1
    %1847 = vsyncpa [#allocation5], 1

</llo_original>
